<compile_context>
chip_gen: v7x
topology: tpu7x:2x2x1
jax: 0.10.0
libtpu: 0.0.40
codegen_flags: <defaults>
</compile_context>

<pallas_src>
import jax
import jax.numpy as jnp
from jax.experimental import pallas as pl
from jax.experimental.pallas import tpu as pltpu


def _round_up(x, m):
    return ((x + m - 1) // m) * m


# ----------------------------------------------------------------------------
# Kernel 1: alpha compositing over a white background (remove_background tail)
# ----------------------------------------------------------------------------
def _composite_kernel(rgba_ref, out_ref):
    # rgba_ref: (4, tnb, 128) f32 ; out_ref: (3, tnb, 128) f32
    a = rgba_ref[3:4, :, :]                              # (1, tnb, 128)
    out_ref[...] = rgba_ref[0:3, :, :] * a + (1.0 - a)


def composite_over_white(rgba_chw):
    """rgba_chw: (4, H, W) float32 in [0, 1]. Returns RGB over white (3, H, W)."""
    _, H, W = rgba_chw.shape
    N = H * W
    N128 = _round_up(N, 128)
    flat = rgba_chw.reshape(4, N)
    if N128 != N:
        flat = jnp.pad(flat, ((0, 0), (0, N128 - N)))
    nb = N128 // 128
    # <=512 row-tiles per step (~0.5 MB blocks at f32); single block for small
    # images.  'parallel' -> shards the grid across v7x's two TensorCores.
    tnb = nb if nb <= 512 else 512
    nb_pad = _round_up(nb, tnb)
    x = flat.reshape(4, nb, 128)
    if nb_pad != nb:
        x = jnp.pad(x, ((0, 0), (0, nb_pad - nb), (0, 0)))
    out = pl.pallas_call(
        _composite_kernel,
        out_shape=jax.ShapeDtypeStruct((3, nb_pad, 128), rgba_chw.dtype),
        grid=(nb_pad // tnb,),
        in_specs=[pl.BlockSpec((4, tnb, 128), lambda i: (0, i, 0))],
        out_specs=pl.BlockSpec((3, tnb, 128), lambda i: (0, i, 0)),
        compiler_params=pltpu.CompilerParams(dimension_semantics=("parallel",)),
    )(x)
    return out.reshape(3, nb_pad * 128)[:, :N].reshape(3, H, W)


# ----------------------------------------------------------------------------
# Kernel 2: fused diffusion step
#   synthetic UNet eps (3x3 conv -> SiLU -> 1x1 conv)  +  Euler-ancestral
#   update  +  latent->RGB decode, all folded into TWO lane-dense MXU matmuls.
# ----------------------------------------------------------------------------
def _fused_step_kernel(scal_ref,    # SMEM (1,): [dt]
                       xin_ref,     # (tp, 40) bf16   im2col(9 taps) ++ noise
                       wcomb_ref,   # (40, HID+128) bf16  [W1 | dec-paths]
                       m_ref,       # (HID, 128) bf16     w2 @ dec_pad
                       b1_ref,      # (1, HID) f32
                       bdec_ref,    # (1, 128) f32        b2 @ dec_pad
                       out_ref):    # (tp, 128) bf16 lane-dense slab
    dt = scal_ref[0]
    HID = b1_ref.shape[1]
    # One MXU matmul yields [hidden pre-activation | (lat + sigma_up*noise)@dec]
    mm = jnp.dot(xin_ref[...], wcomb_ref[...], preferred_element_type=jnp.float32)
    h = mm[:, :HID] + b1_ref[...]
    h = h * jax.nn.sigmoid(h)                          # SiLU (VPU/EUP), f32
    base = mm[:, HID:]                                 # decoded Euler base term
    view = base + dt * (jnp.dot(h.astype(jnp.bfloat16), m_ref[...],
                                preferred_element_type=jnp.float32)
                        + bdec_ref[...])
    out_ref[...] = jnp.clip(view, 0.0, 1.0).astype(out_ref.dtype)


def fused_diffusion_step(xin, params, wcomb, dt, tp=128):
    """xin: (P, 40) bf16 = [9-tap im2col | ancestral noise]. Returns a
    (P_pad, 128) bf16 slab whose first 3 lanes are the decoded RGB view."""
    P, KIN = xin.shape
    HID = params['b1'].shape[1]
    OUTW = params['dec_pad'].shape[1]
    P_pad = max(tp, _round_up(P, tp))
    if P_pad != P:
        xin = jnp.pad(xin, ((0, P_pad - P), (0, 0)))
    scal = jnp.asarray(dt, jnp.float32).reshape(1)     # SMEM scalar, no recompile
    return pl.pallas_call(
        _fused_step_kernel,
        out_shape=jax.ShapeDtypeStruct((P_pad, OUTW), jnp.bfloat16),
        grid=(P_pad // tp,),
        in_specs=[
            pl.BlockSpec(memory_space=pltpu.MemorySpace.SMEM),      # [dt]
            pl.BlockSpec((tp, KIN), lambda i: (i, 0)),              # tiled rows
            pl.BlockSpec((KIN, HID + OUTW), lambda i: (0, 0)),      # resident
            pl.BlockSpec((HID, OUTW), lambda i: (0, 0)),            # resident
            pl.BlockSpec((1, HID), lambda i: (0, 0)),
            pl.BlockSpec((1, OUTW), lambda i: (0, 0)),
        ],
        out_specs=pl.BlockSpec((tp, OUTW), lambda i: (i, 0)),
        compiler_params=pltpu.CompilerParams(dimension_semantics=("parallel",)),
    )(scal, xin, wcomb, params['m_dec'], params['b1'], params['b2_dec'])


# ----------------------------------------------------------------------------
# Glue (plain JAX): parameter init, weight composition, pooling/encode, forward
# ----------------------------------------------------------------------------
def init_params(key):
    k1, k2, k3, k4 = jax.random.split(key, 4)
    C, HID, OUTW = 4, 128, 128          # HID multiple of 128 -> MXU-friendly
    w1 = jax.random.normal(k1, (9, C, HID), jnp.float32) / 6.0    # 3x3 taps
    b1 = jnp.zeros((1, HID), jnp.float32)
    w2 = jax.random.normal(k2, (HID, C), jnp.float32) / jnp.sqrt(float(HID))
    b2 = jnp.zeros((1, C), jnp.float32)
    enc_proj = jax.random.normal(k3, (3, C), jnp.float32) * 0.5
    dec = jax.random.normal(k4, (C, 3), jnp.float32) * 0.5
    dec_pad = jnp.zeros((C, OUTW), jnp.float32).at[:, :3].set(dec)
    # Fused tail matrices (composed in f32, cast bf16 for the MXU):
    m_dec = (w2 @ dec_pad).astype(jnp.bfloat16)        # (HID, OUTW)
    b2_dec = b2 @ dec_pad                              # (1, OUTW) f32
    return dict(w1=w1, b1=b1, w2=w2, b2=b2, enc_proj=enc_proj,
                dec_pad=dec_pad, m_dec=m_dec, b2_dec=b2_dec)


def _build_combined_weight(params, sigma_up):
    """(9C + C, HID + 128) weight: conv taps -> hidden, center-tap latent and
    sigma_up-scaled ancestral noise -> decoded base term."""
    C = params['dec_pad'].shape[0]
    HID = params['b1'].shape[1]
    OUTW = params['dec_pad'].shape[1]
    w1_flat = params['w1'].reshape(9 * C, HID)                       # (36, HID)
    wc = jnp.zeros((9 * C + C, HID + OUTW), jnp.float32)
    wc = wc.at[:9 * C, :HID].set(w1_flat)                            # conv -> hidden
    wc = wc.at[4 * C:5 * C, HID:].set(params['dec_pad'])             # lat -> decode
    wc = wc.at[9 * C:, HID:].set(sigma_up * params['dec_pad'])       # noise -> decode
    return wc.astype(jnp.bfloat16)


def multi_viewer_forward(rgba_img, params, key):
    """rgba_img: (4, H, W) float32 RGBA in [0, 1] (alpha = foreground mask,
    standing in for the rembg U2Net output)."""
    _, H, W = rgba_img.shape

    # 1) remove_background: alpha compositing over white (Pallas kernel 1).
    rgb = composite_over_white(rgba_img)                             # (3, H, W)

    # 2) TODO(synk): resize_foreground(0.85) skipped (dynamic bbox crop).

    # 3) "encode" conditioning: 4x4 average pool + channel projection (glue).
    # TODO(synk): fuse this pooling/projection into kernel 1's epilogue to
    #             avoid the full-image HBM round trip at real image sizes.
    Hl, Wl, C = H // 4, W // 4, 4
    pooled = rgb.reshape(3, Hl, 4, Wl, 4).mean(axis=(2, 4))          # (3,Hl,Wl)
    cond = jnp.einsum('chw,cd->hwd', pooled, params['enc_proj'])     # (Hl,Wl,4)

    # 1-step trailing Euler-ancestral schedule (runtime scalars, no recompile).
    sigma, sigma_next = jnp.float32(1.0), jnp.float32(0.5)
    sigma_up = jnp.sqrt(sigma_next**2 * (sigma**2 - sigma_next**2) / sigma**2)
    sigma_down = jnp.sqrt(sigma_next**2 - sigma_up**2)
    dt = sigma_down - sigma          # eps-prediction: derivative == eps

    k_noise, k_anc = jax.random.split(key)
    noise0 = jax.random.normal(k_noise, (Hl, Wl, C), jnp.float32)
    latents = sigma * noise0 + cond
    lat_pad = jnp.pad(latents, ((1, 1), (1, 1), (0, 0)))             # conv halo
    P = Hl * Wl
    anc_noise = jax.random.normal(k_anc, (P, C), jnp.float32)

    # im2col in XLA (lane-dense (P, 36); ~1.4 MB at real latent sizes), with
    # the ancestral noise appended as 4 extra columns -> (P, 40) bf16 LHS.
    wins = [lat_pad[dh:dh + Hl, dw:dw + Wl, :].reshape(P, C)
            for dh in range(3) for dw in range(3)]
    xin = jnp.concatenate(wins + [anc_noise], axis=1).astype(jnp.bfloat16)

    wcomb = _build_combined_weight(params, sigma_up)
    out_slab = fused_diffusion_step(xin, params, wcomb, dt)          # (P_pad,128) bf16

    # First 3 lanes hold the decoded view; tile into a 3x2 zero123plus-style grid.
    view = out_slab[:P, :3].astype(jnp.float32).reshape(Hl, Wl, 3)
    multi_views = jnp.tile(view, (3, 2, 1))                          # (3*Hl, 2*Wl, 3)
    return multi_views


if __name__ == "__main__":
    key = jax.random.PRNGKey(0)
    k_img, k_param, k_fwd = jax.random.split(key, 3)

    H = W = 64
    rgb = jax.random.uniform(k_img, (3, H, W), jnp.float32)
    yy, xx = jnp.meshgrid(jnp.arange(H), jnp.arange(W), indexing='ij')
    alpha = ((yy >= 16) & (yy < 48) & (xx >= 16) & (xx < 48)).astype(jnp.float32)[None]
    rgba = jnp.concatenate([rgb, alpha], axis=0)                     # (4, 64, 64)

    params = init_params(k_param)
    fwd = jax.jit(multi_viewer_forward)
    out = fwd(rgba, params, k_fwd)
    out = jax.block_until_ready(out)

    assert out.shape == (48, 32, 3), out.shape
    assert bool(jnp.isfinite(out).all())
    print("KERNEL_OK")
</pallas_src>

<mosaic_0001>
module attributes {stable_mosaic.version = 11 : i64} {
  func.func @_composite_kernel(%arg0: i32, %arg1: memref<4x32x128xf32, #tpu.memory_space<vmem>>, %arg2: memref<3x32x128xf32, #tpu.memory_space<vmem>>) attributes {dimension_semantics = [#tpu.dimension_semantics<parallel>], iteration_bounds = array<i64: 1>, scalar_prefetch = 0 : i64, scratch_operands = 0 : i64, tpu.core_type = #tpu.core_type<tc>, window_params = [{transform_indices = @transform_0, window_bounds = array<i64: 4, 32, 128>}, {transform_indices = @transform_1, window_bounds = array<i64: 3, 32, 128>}]} {
    %c3 = arith.constant 3 : index
    %c0 = arith.constant 0 : index
    %c0_0 = arith.constant 0 : index
    %0 = vector.load %arg1[%c3, %c0, %c0_0] : memref<4x32x128xf32, #tpu.memory_space<vmem>>, vector<1x32x128xf32>
    %c0_1 = arith.constant 0 : index
    %c0_2 = arith.constant 0 : index
    %c0_3 = arith.constant 0 : index
    %1 = vector.load %arg1[%c0_1, %c0_2, %c0_3] : memref<4x32x128xf32, #tpu.memory_space<vmem>>, vector<3x32x128xf32>
    %2 = vector.broadcast %0 : vector<1x32x128xf32> to vector<3x32x128xf32>
    %3 = arith.mulf %1, %2 : vector<3x32x128xf32>
    %cst = arith.constant 1.000000e+00 : f32
    %4 = vector.broadcast %cst : f32 to vector<1x32x128xf32>
    %5 = arith.subf %4, %0 : vector<1x32x128xf32>
    %6 = vector.broadcast %5 : vector<1x32x128xf32> to vector<3x32x128xf32>
    %7 = arith.addf %3, %6 : vector<3x32x128xf32>
    %c0_4 = arith.constant 0 : index
    %c0_5 = arith.constant 0 : index
    %c0_6 = arith.constant 0 : index
    %8 = vector.load %arg2[%c0_4, %c0_5, %c0_6] : memref<3x32x128xf32, #tpu.memory_space<vmem>>, vector<3x32x128xf32>
    tpu.vector_store %arg2[%c0_4, %c0_5, %c0_6], %7 {strides = array<i32>} : memref<3x32x128xf32, #tpu.memory_space<vmem>>, vector<3x32x128xf32>,
    return
  }
  func.func @transform_0(%arg0: i32) -> (i32, i32, i32) {
    %c0_i32 = arith.constant 0 : i32
    %c0_i32_0 = arith.constant 0 : i32
    %c0_i32_1 = arith.constant 0 : i32
    return %c0_i32, %arg0, %c0_i32_0 : i32, i32, i32
  }
  func.func @transform_1(%arg0: i32) -> (i32, i32, i32) {
    %c0_i32 = arith.constant 0 : i32
    %c0_i32_0 = arith.constant 0 : i32
    %c0_i32_1 = arith.constant 0 : i32
    return %c0_i32, %arg0, %c0_i32_0 : i32, i32, i32
  }
}

module attributes {stable_mosaic.version = 11 : i64} {
  func.func @_fused_step_kernel(%arg0: i32, %arg1: memref<1xf32, #tpu.memory_space<smem>>, %arg2: memref<128x40xbf16, #tpu.memory_space<vmem>>, %arg3: memref<40x256xbf16, #tpu.memory_space<vmem>>, %arg4: memref<128x128xbf16, #tpu.memory_space<vmem>>, %arg5: memref<1x128xf32, #tpu.memory_space<vmem>>, %arg6: memref<1x128xf32, #tpu.memory_space<vmem>>, %arg7: memref<128x128xbf16, #tpu.memory_space<vmem>>) attributes {dimension_semantics = [#tpu.dimension_semantics<parallel>], iteration_bounds = array<i64: 2>, scalar_prefetch = 0 : i64, scratch_operands = 0 : i64, tpu.core_type = #tpu.core_type<tc>, window_params = [{transform_indices = @transform_0, window_bounds = array<i64: 1>}, {transform_indices = @transform_1, window_bounds = array<i64: 128, 40>}, {pipeline_mode = #tpu.pipeline_mode<synchronous>, transform_indices = @transform_2, window_bounds = array<i64: 40, 256>}, {pipeline_mode = #tpu.pipeline_mode<synchronous>, transform_indices = @transform_3, window_bounds = array<i64: 128, 128>}, {pipeline_mode = #tpu.pipeline_mode<synchronous>, transform_indices = @transform_4, window_bounds = array<i64: 1, 128>}, {pipeline_mode = #tpu.pipeline_mode<synchronous>, transform_indices = @transform_5, window_bounds = array<i64: 1, 128>}, {transform_indices = @transform_6, window_bounds = array<i64: 128, 128>}]} {
    %c0 = arith.constant 0 : index
    %0 = memref.load %arg1[%c0] : memref<1xf32, #tpu.memory_space<smem>>
    %c0_0 = arith.constant 0 : index
    %c0_1 = arith.constant 0 : index
    %1 = vector.load %arg2[%c0_0, %c0_1] : memref<128x40xbf16, #tpu.memory_space<vmem>>, vector<128x40xbf16>
    %c0_2 = arith.constant 0 : index
    %c0_3 = arith.constant 0 : index
    %2 = vector.load %arg3[%c0_2, %c0_3] : memref<40x256xbf16, #tpu.memory_space<vmem>>, vector<40x256xbf16>
    %cst = arith.constant dense<0.000000e+00> : vector<128x256xf32>
    %3 = tpu.matmul %1, %2, %cst {dimension_numbers = #tpu.dot_dimension_numbers<[1], [0], [0], [1], [0, 0, 1, 1], [], []>} : vector<128x40xbf16>, vector<40x256xbf16>, vector<128x256xf32> -> vector<128x256xf32>
    %4 = vector.extract_strided_slice %3 {offsets = [0, 0], sizes = [128, 128], strides = [1, 1]} : vector<128x256xf32> to vector<128x128xf32>
    %c0_4 = arith.constant 0 : index
    %c0_5 = arith.constant 0 : index
    %5 = vector.load %arg5[%c0_4, %c0_5] : memref<1x128xf32, #tpu.memory_space<vmem>>, vector<1x128xf32>
    %6 = vector.broadcast %5 : vector<1x128xf32> to vector<128x128xf32>
    %7 = arith.addf %4, %6 : vector<128x128xf32>
    %8 = arith.negf %7 : vector<128x128xf32>
    %9 = math.exp %8 : vector<128x128xf32>
    %cst_6 = arith.constant 1.000000e+00 : f32
    %10 = vector.broadcast %cst_6 : f32 to vector<128x128xf32>
    %11 = arith.addf %10, %9 : vector<128x128xf32>
    %12 = arith.divf %10, %11 : vector<128x128xf32>
    %13 = arith.mulf %7, %12 : vector<128x128xf32>
    %14 = vector.extract_strided_slice %3 {offsets = [0, 128], sizes = [128, 128], strides = [1, 1]} : vector<128x256xf32> to vector<128x128xf32>
    %15 = arith.truncf %13 : vector<128x128xf32> to vector<128x128xbf16>
    %c0_7 = arith.constant 0 : index
    %c0_8 = arith.constant 0 : index
    %16 = vector.load %arg4[%c0_7, %c0_8] : memref<128x128xbf16, #tpu.memory_space<vmem>>, vector<128x128xbf16>
    %cst_9 = arith.constant dense<0.000000e+00> : vector<128x128xf32>
    %17 = tpu.matmul %15, %16, %cst_9 {dimension_numbers = #tpu.dot_dimension_numbers<[1], [0], [0], [1], [0, 0, 1, 1], [], []>} : vector<128x128xbf16>, vector<128x128xbf16>, vector<128x128xf32> -> vector<128x128xf32>
    %c0_10 = arith.constant 0 : index
    %c0_11 = arith.constant 0 : index
    %18 = vector.load %arg6[%c0_10, %c0_11] : memref<1x128xf32, #tpu.memory_space<vmem>>, vector<1x128xf32>
    %19 = vector.broadcast %18 : vector<1x128xf32> to vector<128x128xf32>
    %20 = arith.addf %17, %19 : vector<128x128xf32>
    %21 = vector.broadcast %0 : f32 to vector<128x128xf32>
    %22 = arith.mulf %21, %20 : vector<128x128xf32>
    %23 = arith.addf %14, %22 : vector<128x128xf32>
    %cst_12 = arith.constant 0.000000e+00 : f32
    %cst_13 = arith.constant 1.000000e+00 : f32
    %24 = vector.broadcast %cst_12 : f32 to vector<128x128xf32>
    %25 = arith.maximumf %24, %23 : vector<128x128xf32>
    %26 = vector.broadcast %cst_13 : f32 to vector<128x128xf32>
    %27 = arith.minimumf %26, %25 : vector<128x128xf32>
    %28 = arith.truncf %27 : vector<128x128xf32> to vector<128x128xbf16>
    %c0_14 = arith.constant 0 : index
    %c0_15 = arith.constant 0 : index
    %29 = vector.load %arg7[%c0_14, %c0_15] : memref<128x128xbf16, #tpu.memory_space<vmem>>, vector<128x128xbf16>
    tpu.vector_store %arg7[%c0_14, %c0_15], %28 {strides = array<i32>} : memref<128x128xbf16, #tpu.memory_space<vmem>>, vector<128x128xbf16>,
    return
  }
  func.func @transform_0(%arg0: i32) -> i32 {
    %c0_i32 = arith.constant 0 : i32
    %c0_i32_0 = arith.constant 0 : i32
    return %c0_i32 : i32
  }
  func.func @transform_1(%arg0: i32) -> (i32, i32) {
    %c0_i32 = arith.constant 0 : i32
    %c0_i32_0 = arith.constant 0 : i32
    return %arg0, %c0_i32 : i32, i32
  }
  func.func @transform_2(%arg0: i32) -> (i32, i32) {
    %c0_i32 = arith.constant 0 : i32
    %c0_i32_0 = arith.constant 0 : i32
    %c0_i32_1 = arith.constant 0 : i32
    return %c0_i32, %c0_i32_0 : i32, i32
  }
  func.func @transform_3(%arg0: i32) -> (i32, i32) {
    %c0_i32 = arith.constant 0 : i32
    %c0_i32_0 = arith.constant 0 : i32
    %c0_i32_1 = arith.constant 0 : i32
    return %c0_i32, %c0_i32_0 : i32, i32
  }
  func.func @transform_4(%arg0: i32) -> (i32, i32) {
    %c0_i32 = arith.constant 0 : i32
    %c0_i32_0 = arith.constant 0 : i32
    %c0_i32_1 = arith.constant 0 : i32
    return %c0_i32, %c0_i32_0 : i32, i32
  }
  func.func @transform_5(%arg0: i32) -> (i32, i32) {
    %c0_i32 = arith.constant 0 : i32
    %c0_i32_0 = arith.constant 0 : i32
    %c0_i32_1 = arith.constant 0 : i32
    return %c0_i32, %c0_i32_0 : i32, i32
  }
  func.func @transform_6(%arg0: i32) -> (i32, i32) {
    %c0_i32 = arith.constant 0 : i32
    %c0_i32_0 = arith.constant 0 : i32
    return %arg0, %c0_i32 : i32, i32
  }
}

</mosaic_0001>

<llo_original>
// kernel: multi_viewer_forward.4
$region0: #{multi_viewer_forward.4}
  #allocation0 [shape = 'u32[]', space=smem, size = 0x4, offset = 0x4, fixed_abs, tag = 'smem constant byte address 0x4 - core index']
  #allocation1 [shape = 'u32[144,128]{1,0:T(1,128)}', space=vmem, size = 0x12000, scoped, tag = 'internal scratch']
  %s0 = inlined_call_operand.vmem [shape: f32[4,32,128], index: 0, kind: input, shape index: {}]
  %s1 = inlined_call_operand.vmem [shape: f32[3,32,128], index: 1, kind: output, shape index: {}]
  %s2 = sld [smem:[#allocation0]]
  $region14: #{multi_viewer_forward.4} parent=0
    _
  %s4 = ssub.s32 1, %s2
  %s5 = scalar_select 0, %s4, %s2
  // Predicated region
  $region2: #{multi_viewer_forward.4} parent=0 // pred_check
    _
  $region3: #{multi_viewer_forward.4} parent=0 // pred_check_branch
    %7 = sbr.rel (0) target = $region5
  $region4: #{multi_viewer_forward.4} parent=0 // pred_region
    _
  $region5: #{multi_viewer_forward.4} parent=0 // pred_fallthru
    _
  %s8 = scalar_lea.vmem %s0, 96
  %v9 = vld [vmem:[%s8] sm:$0xff]
  %v10 = vld [vmem:[%s8 + $0x8] sm:$0xff]
  %v11 = vld [vmem:[%s8 + $0x10] sm:$0xff]
  %v12 = vld [vmem:[%s8 + $0x18] sm:$0xff]
  %v13 = vld [vmem:[%s0] sm:$0xff]
  %v14 = vld [vmem:[%s0 + $0x8] sm:$0xff]
  %v15 = vld [vmem:[%s0 + $0x10] sm:$0xff]
  %v16 = vld [vmem:[%s0 + $0x18] sm:$0xff]
  %v17 = vld [vmem:[%s0 + $0x20] sm:$0xff]
  %v18 = vld [vmem:[%s0 + $0x28] sm:$0xff]
  %v19 = vld [vmem:[%s0 + $0x30] sm:$0xff]
  %v20 = vld [vmem:[%s0 + $0x38] sm:$0xff]
  %v21 = vld [vmem:[%s0 + $0x40] sm:$0xff]
  %v22 = vld [vmem:[%s0 + $0x48] sm:$0xff]
  %v23 = vld [vmem:[%s0 + $0x50] sm:$0xff]
  %v24 = vld [vmem:[%s0 + $0x58] sm:$0xff]
  %v25 = vmul.f32 %v13, %v9
  %v26 = vmul.f32 %v14, %v10
  %v27 = vmul.f32 %v15, %v11
  %v28 = vmul.f32 %v16, %v12
  %v29 = vmul.f32 %v17, %v9
  %v30 = vmul.f32 %v18, %v10
  %v31 = vmul.f32 %v19, %v11
  %v32 = vmul.f32 %v20, %v12
  %v33 = vmul.f32 %v21, %v9
  %v34 = vmul.f32 %v22, %v10
  %v35 = vmul.f32 %v23, %v11
  %v36 = vmul.f32 %v24, %v12
  %v37 = vsub.f32 1.0, %v9
  %v38 = vsub.f32 1.0, %v10
  %v39 = vsub.f32 1.0, %v11
  %v40 = vsub.f32 1.0, %v12
  %v41 = vadd.f32 %v25, %v37
  %v42 = vadd.f32 %v26, %v38
  %v43 = vadd.f32 %v27, %v39
  %v44 = vadd.f32 %v28, %v40
  %v45 = vadd.f32 %v29, %v37
  %v46 = vadd.f32 %v30, %v38
  %v47 = vadd.f32 %v31, %v39
  %v48 = vadd.f32 %v32, %v40
  %v49 = vadd.f32 %v33, %v37
  %v50 = vadd.f32 %v34, %v38
  %v51 = vadd.f32 %v35, %v39
  %v52 = vadd.f32 %v36, %v40
  %53 = vst [vmem:[%s1] sm:$0xff] %v41
  %54 = vst [vmem:[%s1 + $0x8] sm:$0xff] %v42
  %55 = vst [vmem:[%s1 + $0x10] sm:$0xff] %v43
  %56 = vst [vmem:[%s1 + $0x18] sm:$0xff] %v44
  %57 = vst [vmem:[%s1 + $0x20] sm:$0xff] %v45
  %58 = vst [vmem:[%s1 + $0x28] sm:$0xff] %v46
  %59 = vst [vmem:[%s1 + $0x30] sm:$0xff] %v47
  %60 = vst [vmem:[%s1 + $0x38] sm:$0xff] %v48
  %61 = vst [vmem:[%s1 + $0x40] sm:$0xff] %v49
  %62 = vst [vmem:[%s1 + $0x48] sm:$0xff] %v50
  %63 = vst [vmem:[%s1 + $0x50] sm:$0xff] %v51
  %64 = vst [vmem:[%s1 + $0x58] sm:$0xff] %v52
  // Predicated region
  $region6: #{multi_viewer_forward.4} parent=0 // pred_check
    _
  $region7: #{multi_viewer_forward.4} parent=0 // pred_check_branch
    %66 = sbr.rel (0) target = $region9
  $region8: #{multi_viewer_forward.4} parent=0 // pred_region
    _
  $region9: #{multi_viewer_forward.4} parent=0 // pred_fallthru
    _
  // Predicated region
  $region10: #{multi_viewer_forward.4} parent=0 // pred_check
    _
  $region11: #{multi_viewer_forward.4} parent=0 // pred_check_branch
    %68 = sbr.rel (0) target = $region13
  $region12: #{multi_viewer_forward.4} parent=0 // pred_region
    _
  $region13: #{multi_viewer_forward.4} parent=0 // pred_fallthru
    _

// kernel: tile.7
$region0: #{tile.7}
  %s0 = inlined_call_operand.vmem [shape: f32[3,16,2,16,3], index: 0, kind: input, shape index: {}]
  %s1 = inlined_call_operand.vmem [shape: f32[48,32,3], index: 1, kind: output, shape index: {}]
  $region1: #{tile.7} parent=0
    #allocation0 [shape = 'u8[589824]{0}', space=vmem, size = 0x90000, scoped, tag = 'scoped mem for input reshape']
    %s3 = sshllo.u32 0, 2
    %s4 = smul.addr 2, 143
    %s5 = scalar_lea.vmem %s0, %s4
    %v6 = vld [vmem:[%s5] sm:%s3]
    %s7 = scalar_lea.vmem [#allocation0], 1144
    %8 = vst [vmem:[%s7] sm:%s3] %v6
    %s9 = smul.addr 2, 142
    %s10 = scalar_lea.vmem %s0, %s9
    %v11 = vld [vmem:[%s10] sm:%s3]
    %s12 = scalar_lea.vmem [#allocation0], 1136
    %13 = vst [vmem:[%s12] sm:%s3] %v11
    %s14 = smul.addr 2, 141
    %s15 = scalar_lea.vmem %s0, %s14
    %v16 = vld [vmem:[%s15] sm:%s3]
    %s17 = scalar_lea.vmem [#allocation0], 1128
    %18 = vst [vmem:[%s17] sm:%s3] %v16
    %s19 = smul.addr 2, 140
    %s20 = scalar_lea.vmem %s0, %s19
    %v21 = vld [vmem:[%s20] sm:%s3]
    %s22 = scalar_lea.vmem [#allocation0], 1120
    %23 = vst [vmem:[%s22] sm:%s3] %v21
    %s24 = smul.addr 2, 139
    %s25 = scalar_lea.vmem %s0, %s24
    %v26 = vld [vmem:[%s25] sm:%s3]
    %s27 = scalar_lea.vmem [#allocation0], 1112
    %28 = vst [vmem:[%s27] sm:%s3] %v26
    %s29 = smul.addr 2, 138
    %s30 = scalar_lea.vmem %s0, %s29
    %v31 = vld [vmem:[%s30] sm:%s3]
    %s32 = scalar_lea.vmem [#allocation0], 1104
    %33 = vst [vmem:[%s32] sm:%s3] %v31
    %s34 = smul.addr 2, 137
    %s35 = scalar_lea.vmem %s0, %s34
    %v36 = vld [vmem:[%s35] sm:%s3]
    %s37 = scalar_lea.vmem [#allocation0], 1096
    %38 = vst [vmem:[%s37] sm:%s3] %v36
    %s39 = smul.addr 2, 136
    %s40 = scalar_lea.vmem %s0, %s39
    %v41 = vld [vmem:[%s40] sm:%s3]
    %s42 = scalar_lea.vmem [#allocation0], 1088
    %43 = vst [vmem:[%s42] sm:%s3] %v41
    %s44 = smul.addr 2, 135
    %s45 = scalar_lea.vmem %s0, %s44
    %v46 = vld [vmem:[%s45] sm:%s3]
    %s47 = scalar_lea.vmem [#allocation0], 1080
    %48 = vst [vmem:[%s47] sm:%s3] %v46
    %s49 = smul.addr 2, 134
    %s50 = scalar_lea.vmem %s0, %s49
    %v51 = vld [vmem:[%s50] sm:%s3]
    %s52 = scalar_lea.vmem [#allocation0], 1072
    %53 = vst [vmem:[%s52] sm:%s3] %v51
    %s54 = smul.addr 2, 133
    %s55 = scalar_lea.vmem %s0, %s54
    %v56 = vld [vmem:[%s55] sm:%s3]
    %s57 = scalar_lea.vmem [#allocation0], 1064
    %58 = vst [vmem:[%s57] sm:%s3] %v56
    %s59 = smul.addr 2, 132
    %s60 = scalar_lea.vmem %s0, %s59
    %v61 = vld [vmem:[%s60] sm:%s3]
    %s62 = scalar_lea.vmem [#allocation0], 1056
    %63 = vst [vmem:[%s62] sm:%s3] %v61
    %s64 = smul.addr 2, 131
    %s65 = scalar_lea.vmem %s0, %s64
    %v66 = vld [vmem:[%s65] sm:%s3]
    %s67 = scalar_lea.vmem [#allocation0], 1048
    %68 = vst [vmem:[%s67] sm:%s3] %v66
    %s69 = smul.addr 2, 130
    %s70 = scalar_lea.vmem %s0, %s69
    %v71 = vld [vmem:[%s70] sm:%s3]
    %s72 = scalar_lea.vmem [#allocation0], 1040
    %73 = vst [vmem:[%s72] sm:%s3] %v71
    %s74 = smul.addr 2, 129
    %s75 = scalar_lea.vmem %s0, %s74
    %v76 = vld [vmem:[%s75] sm:%s3]
    %s77 = scalar_lea.vmem [#allocation0], 1032
    %78 = vst [vmem:[%s77] sm:%s3] %v76
    %s79 = smul.addr 2, 128
    %s80 = scalar_lea.vmem %s0, %s79
    %v81 = vld [vmem:[%s80] sm:%s3]
    %s82 = scalar_lea.vmem [#allocation0], 1024
    %83 = vst [vmem:[%s82] sm:%s3] %v81
    %s84 = smul.addr 2, 127
    %s85 = scalar_lea.vmem %s0, %s84
    %v86 = vld [vmem:[%s85] sm:%s3]
    %s87 = scalar_lea.vmem [#allocation0], 1016
    %88 = vst [vmem:[%s87] sm:%s3] %v86
    %s89 = smul.addr 2, 126
    %s90 = scalar_lea.vmem %s0, %s89
    %v91 = vld [vmem:[%s90] sm:%s3]
    %s92 = scalar_lea.vmem [#allocation0], 1008
    %93 = vst [vmem:[%s92] sm:%s3] %v91
    %s94 = smul.addr 2, 125
    %s95 = scalar_lea.vmem %s0, %s94
    %v96 = vld [vmem:[%s95] sm:%s3]
    %s97 = scalar_lea.vmem [#allocation0], 1000
    %98 = vst [vmem:[%s97] sm:%s3] %v96
    %s99 = smul.addr 2, 124
    %s100 = scalar_lea.vmem %s0, %s99
    %v101 = vld [vmem:[%s100] sm:%s3]
    %s102 = scalar_lea.vmem [#allocation0], 992
    %103 = vst [vmem:[%s102] sm:%s3] %v101
    %s104 = smul.addr 2, 123
    %s105 = scalar_lea.vmem %s0, %s104
    %v106 = vld [vmem:[%s105] sm:%s3]
    %s107 = scalar_lea.vmem [#allocation0], 984
    %108 = vst [vmem:[%s107] sm:%s3] %v106
    %s109 = smul.addr 2, 122
    %s110 = scalar_lea.vmem %s0, %s109
    %v111 = vld [vmem:[%s110] sm:%s3]
    %s112 = scalar_lea.vmem [#allocation0], 976
    %113 = vst [vmem:[%s112] sm:%s3] %v111
    %s114 = smul.addr 2, 121
    %s115 = scalar_lea.vmem %s0, %s114
    %v116 = vld [vmem:[%s115] sm:%s3]
    %s117 = scalar_lea.vmem [#allocation0], 968
    %118 = vst [vmem:[%s117] sm:%s3] %v116
    %s119 = smul.addr 2, 120
    %s120 = scalar_lea.vmem %s0, %s119
    %v121 = vld [vmem:[%s120] sm:%s3]
    %s122 = scalar_lea.vmem [#allocation0], 960
    %123 = vst [vmem:[%s122] sm:%s3] %v121
    %s124 = smul.addr 2, 119
    %s125 = scalar_lea.vmem %s0, %s124
    %v126 = vld [vmem:[%s125] sm:%s3]
    %s127 = scalar_lea.vmem [#allocation0], 952
    %128 = vst [vmem:[%s127] sm:%s3] %v126
    %s129 = smul.addr 2, 118
    %s130 = scalar_lea.vmem %s0, %s129
    %v131 = vld [vmem:[%s130] sm:%s3]
    %s132 = scalar_lea.vmem [#allocation0], 944
    %133 = vst [vmem:[%s132] sm:%s3] %v131
    %s134 = smul.addr 2, 117
    %s135 = scalar_lea.vmem %s0, %s134
    %v136 = vld [vmem:[%s135] sm:%s3]
    %s137 = scalar_lea.vmem [#allocation0], 936
    %138 = vst [vmem:[%s137] sm:%s3] %v136
    %s139 = smul.addr 2, 116
    %s140 = scalar_lea.vmem %s0, %s139
    %v141 = vld [vmem:[%s140] sm:%s3]
    %s142 = scalar_lea.vmem [#allocation0], 928
    %143 = vst [vmem:[%s142] sm:%s3] %v141
    %s144 = smul.addr 2, 115
    %s145 = scalar_lea.vmem %s0, %s144
    %v146 = vld [vmem:[%s145] sm:%s3]
    %s147 = scalar_lea.vmem [#allocation0], 920
    %148 = vst [vmem:[%s147] sm:%s3] %v146
    %s149 = smul.addr 2, 114
    %s150 = scalar_lea.vmem %s0, %s149
    %v151 = vld [vmem:[%s150] sm:%s3]
    %s152 = scalar_lea.vmem [#allocation0], 912
    %153 = vst [vmem:[%s152] sm:%s3] %v151
    %s154 = smul.addr 2, 113
    %s155 = scalar_lea.vmem %s0, %s154
    %v156 = vld [vmem:[%s155] sm:%s3]
    %s157 = scalar_lea.vmem [#allocation0], 904
    %158 = vst [vmem:[%s157] sm:%s3] %v156
    %s159 = smul.addr 2, 112
    %s160 = scalar_lea.vmem %s0, %s159
    %v161 = vld [vmem:[%s160] sm:%s3]
    %s162 = scalar_lea.vmem [#allocation0], 896
    %163 = vst [vmem:[%s162] sm:%s3] %v161
    %s164 = smul.addr 2, 111
    %s165 = scalar_lea.vmem %s0, %s164
    %v166 = vld [vmem:[%s165] sm:%s3]
    %s167 = scalar_lea.vmem [#allocation0], 888
    %168 = vst [vmem:[%s167] sm:%s3] %v166
    %s169 = smul.addr 2, 110
    %s170 = scalar_lea.vmem %s0, %s169
    %v171 = vld [vmem:[%s170] sm:%s3]
    %s172 = scalar_lea.vmem [#allocation0], 880
    %173 = vst [vmem:[%s172] sm:%s3] %v171
    %s174 = smul.addr 2, 109
    %s175 = scalar_lea.vmem %s0, %s174
    %v176 = vld [vmem:[%s175] sm:%s3]
    %s177 = scalar_lea.vmem [#allocation0], 872
    %178 = vst [vmem:[%s177] sm:%s3] %v176
    %s179 = smul.addr 2, 108
    %s180 = scalar_lea.vmem %s0, %s179
    %v181 = vld [vmem:[%s180] sm:%s3]
    %s182 = scalar_lea.vmem [#allocation0], 864
    %183 = vst [vmem:[%s182] sm:%s3] %v181
    %s184 = smul.addr 2, 107
    %s185 = scalar_lea.vmem %s0, %s184
    %v186 = vld [vmem:[%s185] sm:%s3]
    %s187 = scalar_lea.vmem [#allocation0], 856
    %188 = vst [vmem:[%s187] sm:%s3] %v186
    %s189 = smul.addr 2, 106
    %s190 = scalar_lea.vmem %s0, %s189
    %v191 = vld [vmem:[%s190] sm:%s3]
    %s192 = scalar_lea.vmem [#allocation0], 848
    %193 = vst [vmem:[%s192] sm:%s3] %v191
    %s194 = smul.addr 2, 105
    %s195 = scalar_lea.vmem %s0, %s194
    %v196 = vld [vmem:[%s195] sm:%s3]
    %s197 = scalar_lea.vmem [#allocation0], 840
    %198 = vst [vmem:[%s197] sm:%s3] %v196
    %s199 = smul.addr 2, 104
    %s200 = scalar_lea.vmem %s0, %s199
    %v201 = vld [vmem:[%s200] sm:%s3]
    %s202 = scalar_lea.vmem [#allocation0], 832
    %203 = vst [vmem:[%s202] sm:%s3] %v201
    %s204 = smul.addr 2, 103
    %s205 = scalar_lea.vmem %s0, %s204
    %v206 = vld [vmem:[%s205] sm:%s3]
    %s207 = scalar_lea.vmem [#allocation0], 824
    %208 = vst [vmem:[%s207] sm:%s3] %v206
    %s209 = smul.addr 2, 102
    %s210 = scalar_lea.vmem %s0, %s209
    %v211 = vld [vmem:[%s210] sm:%s3]
    %s212 = scalar_lea.vmem [#allocation0], 816
    %213 = vst [vmem:[%s212] sm:%s3] %v211
    %s214 = smul.addr 2, 101
    %s215 = scalar_lea.vmem %s0, %s214
    %v216 = vld [vmem:[%s215] sm:%s3]
    %s217 = scalar_lea.vmem [#allocation0], 808
    %218 = vst [vmem:[%s217] sm:%s3] %v216
    %s219 = smul.addr 2, 100
    %s220 = scalar_lea.vmem %s0, %s219
    %v221 = vld [vmem:[%s220] sm:%s3]
    %s222 = scalar_lea.vmem [#allocation0], 800
    %223 = vst [vmem:[%s222] sm:%s3] %v221
    %s224 = smul.addr 2, 99
    %s225 = scalar_lea.vmem %s0, %s224
    %v226 = vld [vmem:[%s225] sm:%s3]
    %s227 = scalar_lea.vmem [#allocation0], 792
    %228 = vst [vmem:[%s227] sm:%s3] %v226
    %s229 = smul.addr 2, 98
    %s230 = scalar_lea.vmem %s0, %s229
    %v231 = vld [vmem:[%s230] sm:%s3]
    %s232 = scalar_lea.vmem [#allocation0], 784
    %233 = vst [vmem:[%s232] sm:%s3] %v231
    %s234 = smul.addr 2, 97
    %s235 = scalar_lea.vmem %s0, %s234
    %v236 = vld [vmem:[%s235] sm:%s3]
    %s237 = scalar_lea.vmem [#allocation0], 776
    %238 = vst [vmem:[%s237] sm:%s3] %v236
    %s239 = smul.addr 2, 96
    %s240 = scalar_lea.vmem %s0, %s239
    %v241 = vld [vmem:[%s240] sm:%s3]
    %s242 = scalar_lea.vmem [#allocation0], 768
    %243 = vst [vmem:[%s242] sm:%s3] %v241
    %s244 = smul.addr 2, 95
    %s245 = scalar_lea.vmem %s0, %s244
    %v246 = vld [vmem:[%s245] sm:%s3]
    %s247 = scalar_lea.vmem [#allocation0], 760
    %248 = vst [vmem:[%s247] sm:%s3] %v246
    %s249 = smul.addr 2, 94
    %s250 = scalar_lea.vmem %s0, %s249
    %v251 = vld [vmem:[%s250] sm:%s3]
    %s252 = scalar_lea.vmem [#allocation0], 752
    %253 = vst [vmem:[%s252] sm:%s3] %v251
    %s254 = smul.addr 2, 93
    %s255 = scalar_lea.vmem %s0, %s254
    %v256 = vld [vmem:[%s255] sm:%s3]
    %s257 = scalar_lea.vmem [#allocation0], 744
    %258 = vst [vmem:[%s257] sm:%s3] %v256
    %s259 = smul.addr 2, 92
    %s260 = scalar_lea.vmem %s0, %s259
    %v261 = vld [vmem:[%s260] sm:%s3]
    %s262 = scalar_lea.vmem [#allocation0], 736
    %263 = vst [vmem:[%s262] sm:%s3] %v261
    %s264 = smul.addr 2, 91
    %s265 = scalar_lea.vmem %s0, %s264
    %v266 = vld [vmem:[%s265] sm:%s3]
    %s267 = scalar_lea.vmem [#allocation0], 728
    %268 = vst [vmem:[%s267] sm:%s3] %v266
    %s269 = smul.addr 2, 90
    %s270 = scalar_lea.vmem %s0, %s269
    %v271 = vld [vmem:[%s270] sm:%s3]
    %s272 = scalar_lea.vmem [#allocation0], 720
    %273 = vst [vmem:[%s272] sm:%s3] %v271
    %s274 = smul.addr 2, 89
    %s275 = scalar_lea.vmem %s0, %s274
    %v276 = vld [vmem:[%s275] sm:%s3]
    %s277 = scalar_lea.vmem [#allocation0], 712
    %278 = vst [vmem:[%s277] sm:%s3] %v276
    %s279 = smul.addr 2, 88
    %s280 = scalar_lea.vmem %s0, %s279
    %v281 = vld [vmem:[%s280] sm:%s3]
    %s282 = scalar_lea.vmem [#allocation0], 704
    %283 = vst [vmem:[%s282] sm:%s3] %v281
    %s284 = smul.addr 2, 87
    %s285 = scalar_lea.vmem %s0, %s284
    %v286 = vld [vmem:[%s285] sm:%s3]
    %s287 = scalar_lea.vmem [#allocation0], 696
    %288 = vst [vmem:[%s287] sm:%s3] %v286
    %s289 = smul.addr 2, 86
    %s290 = scalar_lea.vmem %s0, %s289
    %v291 = vld [vmem:[%s290] sm:%s3]
    %s292 = scalar_lea.vmem [#allocation0], 688
    %293 = vst [vmem:[%s292] sm:%s3] %v291
    %s294 = smul.addr 2, 85
    %s295 = scalar_lea.vmem %s0, %s294
    %v296 = vld [vmem:[%s295] sm:%s3]
    %s297 = scalar_lea.vmem [#allocation0], 680
    %298 = vst [vmem:[%s297] sm:%s3] %v296
    %s299 = smul.addr 2, 84
    %s300 = scalar_lea.vmem %s0, %s299
    %v301 = vld [vmem:[%s300] sm:%s3]
    %s302 = scalar_lea.vmem [#allocation0], 672
    %303 = vst [vmem:[%s302] sm:%s3] %v301
    %s304 = smul.addr 2, 83
    %s305 = scalar_lea.vmem %s0, %s304
    %v306 = vld [vmem:[%s305] sm:%s3]
    %s307 = scalar_lea.vmem [#allocation0], 664
    %308 = vst [vmem:[%s307] sm:%s3] %v306
    %s309 = smul.addr 2, 82
    %s310 = scalar_lea.vmem %s0, %s309
    %v311 = vld [vmem:[%s310] sm:%s3]
    %s312 = scalar_lea.vmem [#allocation0], 656
    %313 = vst [vmem:[%s312] sm:%s3] %v311
    %s314 = smul.addr 2, 81
    %s315 = scalar_lea.vmem %s0, %s314
    %v316 = vld [vmem:[%s315] sm:%s3]
    %s317 = scalar_lea.vmem [#allocation0], 648
    %318 = vst [vmem:[%s317] sm:%s3] %v316
    %s319 = smul.addr 2, 80
    %s320 = scalar_lea.vmem %s0, %s319
    %v321 = vld [vmem:[%s320] sm:%s3]
    %s322 = scalar_lea.vmem [#allocation0], 640
    %323 = vst [vmem:[%s322] sm:%s3] %v321
    %s324 = smul.addr 2, 79
    %s325 = scalar_lea.vmem %s0, %s324
    %v326 = vld [vmem:[%s325] sm:%s3]
    %s327 = scalar_lea.vmem [#allocation0], 632
    %328 = vst [vmem:[%s327] sm:%s3] %v326
    %s329 = smul.addr 2, 78
    %s330 = scalar_lea.vmem %s0, %s329
    %v331 = vld [vmem:[%s330] sm:%s3]
    %s332 = scalar_lea.vmem [#allocation0], 624
    %333 = vst [vmem:[%s332] sm:%s3] %v331
    %s334 = smul.addr 2, 77
    %s335 = scalar_lea.vmem %s0, %s334
    %v336 = vld [vmem:[%s335] sm:%s3]
    %s337 = scalar_lea.vmem [#allocation0], 616
    %338 = vst [vmem:[%s337] sm:%s3] %v336
    %s339 = smul.addr 2, 76
    %s340 = scalar_lea.vmem %s0, %s339
    %v341 = vld [vmem:[%s340] sm:%s3]
    %s342 = scalar_lea.vmem [#allocation0], 608
    %343 = vst [vmem:[%s342] sm:%s3] %v341
    %s344 = smul.addr 2, 75
    %s345 = scalar_lea.vmem %s0, %s344
    %v346 = vld [vmem:[%s345] sm:%s3]
    %s347 = scalar_lea.vmem [#allocation0], 600
    %348 = vst [vmem:[%s347] sm:%s3] %v346
    %s349 = smul.addr 2, 74
    %s350 = scalar_lea.vmem %s0, %s349
    %v351 = vld [vmem:[%s350] sm:%s3]
    %s352 = scalar_lea.vmem [#allocation0], 592
    %353 = vst [vmem:[%s352] sm:%s3] %v351
    %s354 = smul.addr 2, 73
    %s355 = scalar_lea.vmem %s0, %s354
    %v356 = vld [vmem:[%s355] sm:%s3]
    %s357 = scalar_lea.vmem [#allocation0], 584
    %358 = vst [vmem:[%s357] sm:%s3] %v356
    %s359 = smul.addr 2, 72
    %s360 = scalar_lea.vmem %s0, %s359
    %v361 = vld [vmem:[%s360] sm:%s3]
    %s362 = scalar_lea.vmem [#allocation0], 576
    %363 = vst [vmem:[%s362] sm:%s3] %v361
    %s364 = smul.addr 2, 71
    %s365 = scalar_lea.vmem %s0, %s364
    %v366 = vld [vmem:[%s365] sm:%s3]
    %s367 = scalar_lea.vmem [#allocation0], 568
    %368 = vst [vmem:[%s367] sm:%s3] %v366
    %s369 = smul.addr 2, 70
    %s370 = scalar_lea.vmem %s0, %s369
    %v371 = vld [vmem:[%s370] sm:%s3]
    %s372 = scalar_lea.vmem [#allocation0], 560
    %373 = vst [vmem:[%s372] sm:%s3] %v371
    %s374 = smul.addr 2, 69
    %s375 = scalar_lea.vmem %s0, %s374
    %v376 = vld [vmem:[%s375] sm:%s3]
    %s377 = scalar_lea.vmem [#allocation0], 552
    %378 = vst [vmem:[%s377] sm:%s3] %v376
    %s379 = smul.addr 2, 68
    %s380 = scalar_lea.vmem %s0, %s379
    %v381 = vld [vmem:[%s380] sm:%s3]
    %s382 = scalar_lea.vmem [#allocation0], 544
    %383 = vst [vmem:[%s382] sm:%s3] %v381
    %s384 = smul.addr 2, 67
    %s385 = scalar_lea.vmem %s0, %s384
    %v386 = vld [vmem:[%s385] sm:%s3]
    %s387 = scalar_lea.vmem [#allocation0], 536
    %388 = vst [vmem:[%s387] sm:%s3] %v386
    %s389 = smul.addr 2, 66
    %s390 = scalar_lea.vmem %s0, %s389
    %v391 = vld [vmem:[%s390] sm:%s3]
    %s392 = scalar_lea.vmem [#allocation0], 528
    %393 = vst [vmem:[%s392] sm:%s3] %v391
    %s394 = smul.addr 2, 65
    %s395 = scalar_lea.vmem %s0, %s394
    %v396 = vld [vmem:[%s395] sm:%s3]
    %s397 = scalar_lea.vmem [#allocation0], 520
    %398 = vst [vmem:[%s397] sm:%s3] %v396
    %s399 = smul.addr 2, 64
    %s400 = scalar_lea.vmem %s0, %s399
    %v401 = vld [vmem:[%s400] sm:%s3]
    %s402 = scalar_lea.vmem [#allocation0], 512
    %403 = vst [vmem:[%s402] sm:%s3] %v401
    %s404 = smul.addr 2, 63
    %s405 = scalar_lea.vmem %s0, %s404
    %v406 = vld [vmem:[%s405] sm:%s3]
    %s407 = scalar_lea.vmem [#allocation0], 504
    %408 = vst [vmem:[%s407] sm:%s3] %v406
    %s409 = smul.addr 2, 62
    %s410 = scalar_lea.vmem %s0, %s409
    %v411 = vld [vmem:[%s410] sm:%s3]
    %s412 = scalar_lea.vmem [#allocation0], 496
    %413 = vst [vmem:[%s412] sm:%s3] %v411
    %s414 = smul.addr 2, 61
    %s415 = scalar_lea.vmem %s0, %s414
    %v416 = vld [vmem:[%s415] sm:%s3]
    %s417 = scalar_lea.vmem [#allocation0], 488
    %418 = vst [vmem:[%s417] sm:%s3] %v416
    %s419 = smul.addr 2, 60
    %s420 = scalar_lea.vmem %s0, %s419
    %v421 = vld [vmem:[%s420] sm:%s3]
    %s422 = scalar_lea.vmem [#allocation0], 480
    %423 = vst [vmem:[%s422] sm:%s3] %v421
    %s424 = smul.addr 2, 59
    %s425 = scalar_lea.vmem %s0, %s424
    %v426 = vld [vmem:[%s425] sm:%s3]
    %s427 = scalar_lea.vmem [#allocation0], 472
    %428 = vst [vmem:[%s427] sm:%s3] %v426
    %s429 = smul.addr 2, 58
    %s430 = scalar_lea.vmem %s0, %s429
    %v431 = vld [vmem:[%s430] sm:%s3]
    %s432 = scalar_lea.vmem [#allocation0], 464
    %433 = vst [vmem:[%s432] sm:%s3] %v431
    %s434 = smul.addr 2, 57
    %s435 = scalar_lea.vmem %s0, %s434
    %v436 = vld [vmem:[%s435] sm:%s3]
    %s437 = scalar_lea.vmem [#allocation0], 456
    %438 = vst [vmem:[%s437] sm:%s3] %v436
    %s439 = smul.addr 2, 56
    %s440 = scalar_lea.vmem %s0, %s439
    %v441 = vld [vmem:[%s440] sm:%s3]
    %s442 = scalar_lea.vmem [#allocation0], 448
    %443 = vst [vmem:[%s442] sm:%s3] %v441
    %s444 = smul.addr 2, 55
    %s445 = scalar_lea.vmem %s0, %s444
    %v446 = vld [vmem:[%s445] sm:%s3]
    %s447 = scalar_lea.vmem [#allocation0], 440
    %448 = vst [vmem:[%s447] sm:%s3] %v446
    %s449 = smul.addr 2, 54
    %s450 = scalar_lea.vmem %s0, %s449
    %v451 = vld [vmem:[%s450] sm:%s3]
    %s452 = scalar_lea.vmem [#allocation0], 432
    %453 = vst [vmem:[%s452] sm:%s3] %v451
    %s454 = smul.addr 2, 53
    %s455 = scalar_lea.vmem %s0, %s454
    %v456 = vld [vmem:[%s455] sm:%s3]
    %s457 = scalar_lea.vmem [#allocation0], 424
    %458 = vst [vmem:[%s457] sm:%s3] %v456
    %s459 = smul.addr 2, 52
    %s460 = scalar_lea.vmem %s0, %s459
    %v461 = vld [vmem:[%s460] sm:%s3]
    %s462 = scalar_lea.vmem [#allocation0], 416
    %463 = vst [vmem:[%s462] sm:%s3] %v461
    %s464 = smul.addr 2, 51
    %s465 = scalar_lea.vmem %s0, %s464
    %v466 = vld [vmem:[%s465] sm:%s3]
    %s467 = scalar_lea.vmem [#allocation0], 408
    %468 = vst [vmem:[%s467] sm:%s3] %v466
    %s469 = smul.addr 2, 50
    %s470 = scalar_lea.vmem %s0, %s469
    %v471 = vld [vmem:[%s470] sm:%s3]
    %s472 = scalar_lea.vmem [#allocation0], 400
    %473 = vst [vmem:[%s472] sm:%s3] %v471
    %s474 = smul.addr 2, 49
    %s475 = scalar_lea.vmem %s0, %s474
    %v476 = vld [vmem:[%s475] sm:%s3]
    %s477 = scalar_lea.vmem [#allocation0], 392
    %478 = vst [vmem:[%s477] sm:%s3] %v476
    %s479 = smul.addr 2, 48
    %s480 = scalar_lea.vmem %s0, %s479
    %v481 = vld [vmem:[%s480] sm:%s3]
    %s482 = scalar_lea.vmem [#allocation0], 384
    %483 = vst [vmem:[%s482] sm:%s3] %v481
    %s484 = smul.addr 2, 47
    %s485 = scalar_lea.vmem %s0, %s484
    %v486 = vld [vmem:[%s485] sm:%s3]
    %s487 = scalar_lea.vmem [#allocation0], 376
    %488 = vst [vmem:[%s487] sm:%s3] %v486
    %s489 = smul.addr 2, 46
    %s490 = scalar_lea.vmem %s0, %s489
    %v491 = vld [vmem:[%s490] sm:%s3]
    %s492 = scalar_lea.vmem [#allocation0], 368
    %493 = vst [vmem:[%s492] sm:%s3] %v491
    %s494 = smul.addr 2, 45
    %s495 = scalar_lea.vmem %s0, %s494
    %v496 = vld [vmem:[%s495] sm:%s3]
    %s497 = scalar_lea.vmem [#allocation0], 360
    %498 = vst [vmem:[%s497] sm:%s3] %v496
    %s499 = smul.addr 2, 44
    %s500 = scalar_lea.vmem %s0, %s499
    %v501 = vld [vmem:[%s500] sm:%s3]
    %s502 = scalar_lea.vmem [#allocation0], 352
    %503 = vst [vmem:[%s502] sm:%s3] %v501
    %s504 = smul.addr 2, 43
    %s505 = scalar_lea.vmem %s0, %s504
    %v506 = vld [vmem:[%s505] sm:%s3]
    %s507 = scalar_lea.vmem [#allocation0], 344
    %508 = vst [vmem:[%s507] sm:%s3] %v506
    %s509 = smul.addr 2, 42
    %s510 = scalar_lea.vmem %s0, %s509
    %v511 = vld [vmem:[%s510] sm:%s3]
    %s512 = scalar_lea.vmem [#allocation0], 336
    %513 = vst [vmem:[%s512] sm:%s3] %v511
    %s514 = smul.addr 2, 41
    %s515 = scalar_lea.vmem %s0, %s514
    %v516 = vld [vmem:[%s515] sm:%s3]
    %s517 = scalar_lea.vmem [#allocation0], 328
    %518 = vst [vmem:[%s517] sm:%s3] %v516
    %s519 = smul.addr 2, 40
    %s520 = scalar_lea.vmem %s0, %s519
    %v521 = vld [vmem:[%s520] sm:%s3]
    %s522 = scalar_lea.vmem [#allocation0], 320
    %523 = vst [vmem:[%s522] sm:%s3] %v521
    %s524 = smul.addr 2, 39
    %s525 = scalar_lea.vmem %s0, %s524
    %v526 = vld [vmem:[%s525] sm:%s3]
    %s527 = scalar_lea.vmem [#allocation0], 312
    %528 = vst [vmem:[%s527] sm:%s3] %v526
    %s529 = smul.addr 2, 38
    %s530 = scalar_lea.vmem %s0, %s529
    %v531 = vld [vmem:[%s530] sm:%s3]
    %s532 = scalar_lea.vmem [#allocation0], 304
    %533 = vst [vmem:[%s532] sm:%s3] %v531
    %s534 = smul.addr 2, 37
    %s535 = scalar_lea.vmem %s0, %s534
    %v536 = vld [vmem:[%s535] sm:%s3]
    %s537 = scalar_lea.vmem [#allocation0], 296
    %538 = vst [vmem:[%s537] sm:%s3] %v536
    %s539 = smul.addr 2, 36
    %s540 = scalar_lea.vmem %s0, %s539
    %v541 = vld [vmem:[%s540] sm:%s3]
    %s542 = scalar_lea.vmem [#allocation0], 288
    %543 = vst [vmem:[%s542] sm:%s3] %v541
    %s544 = smul.addr 2, 35
    %s545 = scalar_lea.vmem %s0, %s544
    %v546 = vld [vmem:[%s545] sm:%s3]
    %s547 = scalar_lea.vmem [#allocation0], 280
    %548 = vst [vmem:[%s547] sm:%s3] %v546
    %s549 = smul.addr 2, 34
    %s550 = scalar_lea.vmem %s0, %s549
    %v551 = vld [vmem:[%s550] sm:%s3]
    %s552 = scalar_lea.vmem [#allocation0], 272
    %553 = vst [vmem:[%s552] sm:%s3] %v551
    %s554 = smul.addr 2, 33
    %s555 = scalar_lea.vmem %s0, %s554
    %v556 = vld [vmem:[%s555] sm:%s3]
    %s557 = scalar_lea.vmem [#allocation0], 264
    %558 = vst [vmem:[%s557] sm:%s3] %v556
    %s559 = smul.addr 2, 32
    %s560 = scalar_lea.vmem %s0, %s559
    %v561 = vld [vmem:[%s560] sm:%s3]
    %s562 = scalar_lea.vmem [#allocation0], 256
    %563 = vst [vmem:[%s562] sm:%s3] %v561
    %s564 = smul.addr 2, 31
    %s565 = scalar_lea.vmem %s0, %s564
    %v566 = vld [vmem:[%s565] sm:%s3]
    %s567 = scalar_lea.vmem [#allocation0], 248
    %568 = vst [vmem:[%s567] sm:%s3] %v566
    %s569 = smul.addr 2, 30
    %s570 = scalar_lea.vmem %s0, %s569
    %v571 = vld [vmem:[%s570] sm:%s3]
    %s572 = scalar_lea.vmem [#allocation0], 240
    %573 = vst [vmem:[%s572] sm:%s3] %v571
    %s574 = smul.addr 2, 29
    %s575 = scalar_lea.vmem %s0, %s574
    %v576 = vld [vmem:[%s575] sm:%s3]
    %s577 = scalar_lea.vmem [#allocation0], 232
    %578 = vst [vmem:[%s577] sm:%s3] %v576
    %s579 = smul.addr 2, 28
    %s580 = scalar_lea.vmem %s0, %s579
    %v581 = vld [vmem:[%s580] sm:%s3]
    %s582 = scalar_lea.vmem [#allocation0], 224
    %583 = vst [vmem:[%s582] sm:%s3] %v581
    %s584 = smul.addr 2, 27
    %s585 = scalar_lea.vmem %s0, %s584
    %v586 = vld [vmem:[%s585] sm:%s3]
    %s587 = scalar_lea.vmem [#allocation0], 216
    %588 = vst [vmem:[%s587] sm:%s3] %v586
    %s589 = smul.addr 2, 26
    %s590 = scalar_lea.vmem %s0, %s589
    %v591 = vld [vmem:[%s590] sm:%s3]
    %s592 = scalar_lea.vmem [#allocation0], 208
    %593 = vst [vmem:[%s592] sm:%s3] %v591
    %s594 = smul.addr 2, 25
    %s595 = scalar_lea.vmem %s0, %s594
    %v596 = vld [vmem:[%s595] sm:%s3]
    %s597 = scalar_lea.vmem [#allocation0], 200
    %598 = vst [vmem:[%s597] sm:%s3] %v596
    %s599 = smul.addr 2, 24
    %s600 = scalar_lea.vmem %s0, %s599
    %v601 = vld [vmem:[%s600] sm:%s3]
    %s602 = scalar_lea.vmem [#allocation0], 192
    %603 = vst [vmem:[%s602] sm:%s3] %v601
    %s604 = smul.addr 2, 23
    %s605 = scalar_lea.vmem %s0, %s604
    %v606 = vld [vmem:[%s605] sm:%s3]
    %s607 = scalar_lea.vmem [#allocation0], 184
    %608 = vst [vmem:[%s607] sm:%s3] %v606
    %s609 = smul.addr 2, 22
    %s610 = scalar_lea.vmem %s0, %s609
    %v611 = vld [vmem:[%s610] sm:%s3]
    %s612 = scalar_lea.vmem [#allocation0], 176
    %613 = vst [vmem:[%s612] sm:%s3] %v611
    %s614 = smul.addr 2, 21
    %s615 = scalar_lea.vmem %s0, %s614
    %v616 = vld [vmem:[%s615] sm:%s3]
    %s617 = scalar_lea.vmem [#allocation0], 168
    %618 = vst [vmem:[%s617] sm:%s3] %v616
    %s619 = smul.addr 2, 20
    %s620 = scalar_lea.vmem %s0, %s619
    %v621 = vld [vmem:[%s620] sm:%s3]
    %s622 = scalar_lea.vmem [#allocation0], 160
    %623 = vst [vmem:[%s622] sm:%s3] %v621
    %s624 = smul.addr 2, 19
    %s625 = scalar_lea.vmem %s0, %s624
    %v626 = vld [vmem:[%s625] sm:%s3]
    %s627 = scalar_lea.vmem [#allocation0], 152
    %628 = vst [vmem:[%s627] sm:%s3] %v626
    %s629 = smul.addr 2, 18
    %s630 = scalar_lea.vmem %s0, %s629
    %v631 = vld [vmem:[%s630] sm:%s3]
    %s632 = scalar_lea.vmem [#allocation0], 144
    %633 = vst [vmem:[%s632] sm:%s3] %v631
    %s634 = smul.addr 2, 17
    %s635 = scalar_lea.vmem %s0, %s634
    %v636 = vld [vmem:[%s635] sm:%s3]
    %s637 = scalar_lea.vmem [#allocation0], 136
    %638 = vst [vmem:[%s637] sm:%s3] %v636
    %s639 = smul.addr 2, 16
    %s640 = scalar_lea.vmem %s0, %s639
    %v641 = vld [vmem:[%s640] sm:%s3]
    %s642 = scalar_lea.vmem [#allocation0], 128
    %643 = vst [vmem:[%s642] sm:%s3] %v641
    %s644 = smul.addr 2, 15
    %s645 = scalar_lea.vmem %s0, %s644
    %v646 = vld [vmem:[%s645] sm:%s3]
    %s647 = scalar_lea.vmem [#allocation0], 120
    %648 = vst [vmem:[%s647] sm:%s3] %v646
    %s649 = smul.addr 2, 14
    %s650 = scalar_lea.vmem %s0, %s649
    %v651 = vld [vmem:[%s650] sm:%s3]
    %s652 = scalar_lea.vmem [#allocation0], 112
    %653 = vst [vmem:[%s652] sm:%s3] %v651
    %s654 = smul.addr 2, 13
    %s655 = scalar_lea.vmem %s0, %s654
    %v656 = vld [vmem:[%s655] sm:%s3]
    %s657 = scalar_lea.vmem [#allocation0], 104
    %658 = vst [vmem:[%s657] sm:%s3] %v656
    %s659 = smul.addr 2, 12
    %s660 = scalar_lea.vmem %s0, %s659
    %v661 = vld [vmem:[%s660] sm:%s3]
    %s662 = scalar_lea.vmem [#allocation0], 96
    %663 = vst [vmem:[%s662] sm:%s3] %v661
    %s664 = smul.addr 2, 11
    %s665 = scalar_lea.vmem %s0, %s664
    %v666 = vld [vmem:[%s665] sm:%s3]
    %s667 = scalar_lea.vmem [#allocation0], 88
    %668 = vst [vmem:[%s667] sm:%s3] %v666
    %s669 = smul.addr 2, 10
    %s670 = scalar_lea.vmem %s0, %s669
    %v671 = vld [vmem:[%s670] sm:%s3]
    %s672 = scalar_lea.vmem [#allocation0], 80
    %673 = vst [vmem:[%s672] sm:%s3] %v671
    %s674 = smul.addr 2, 9
    %s675 = scalar_lea.vmem %s0, %s674
    %v676 = vld [vmem:[%s675] sm:%s3]
    %s677 = scalar_lea.vmem [#allocation0], 72
    %678 = vst [vmem:[%s677] sm:%s3] %v676
    %s679 = smul.addr 2, 8
    %s680 = scalar_lea.vmem %s0, %s679
    %v681 = vld [vmem:[%s680] sm:%s3]
    %s682 = scalar_lea.vmem [#allocation0], 64
    %683 = vst [vmem:[%s682] sm:%s3] %v681
    %s684 = smul.addr 2, 7
    %s685 = scalar_lea.vmem %s0, %s684
    %v686 = vld [vmem:[%s685] sm:%s3]
    %s687 = scalar_lea.vmem [#allocation0], 56
    %688 = vst [vmem:[%s687] sm:%s3] %v686
    %s689 = smul.addr 2, 6
    %s690 = scalar_lea.vmem %s0, %s689
    %v691 = vld [vmem:[%s690] sm:%s3]
    %s692 = scalar_lea.vmem [#allocation0], 48
    %693 = vst [vmem:[%s692] sm:%s3] %v691
    %s694 = smul.addr 2, 5
    %s695 = scalar_lea.vmem %s0, %s694
    %v696 = vld [vmem:[%s695] sm:%s3]
    %s697 = scalar_lea.vmem [#allocation0], 40
    %698 = vst [vmem:[%s697] sm:%s3] %v696
    %s699 = smul.addr 2, 4
    %s700 = scalar_lea.vmem %s0, %s699
    %v701 = vld [vmem:[%s700] sm:%s3]
    %s702 = scalar_lea.vmem [#allocation0], 32
    %703 = vst [vmem:[%s702] sm:%s3] %v701
    %s704 = smul.addr 2, 3
    %s705 = scalar_lea.vmem %s0, %s704
    %v706 = vld [vmem:[%s705] sm:%s3]
    %s707 = scalar_lea.vmem [#allocation0], 24
    %708 = vst [vmem:[%s707] sm:%s3] %v706
    %s709 = smul.addr 2, 2
    %s710 = scalar_lea.vmem %s0, %s709
    %v711 = vld [vmem:[%s710] sm:%s3]
    %s712 = scalar_lea.vmem [#allocation0], 16
    %713 = vst [vmem:[%s712] sm:%s3] %v711
    %s714 = scalar_lea.vmem %s0, 2
    %v715 = vld [vmem:[%s714] sm:%s3]
    %s716 = scalar_lea.vmem [#allocation0], 8
    %717 = vst [vmem:[%s716] sm:%s3] %v715
    %v718 = vld [vmem:[%s0] sm:%s3]
    %719 = vst [vmem:[#allocation0] sm:%s3] %v718
    %v720 = vld [vmem:[#allocation0] ss:$8 sm:$0xf]
    %v721 = vld [vmem:[#allocation0] ss:$8 sm:$0xf0]
    %vm722 = vcmask 1047556
    %v723 = vsel %vm722, %v721, %v720
    %vm724 = vcmask 130048
    %725 = vst.msk [vmem:[%s1] sm:$0xff] %vm724, %v723
    %s726 = scalar_lea.vmem [#allocation0], 64
    %v727 = vld [vmem:[%s726] ss:$8 sm:$0xf]
    %s728 = scalar_lea.vmem [#allocation0], 64
    %v729 = vld [vmem:[%s728] ss:$8 sm:$0xf0]
    %vm730 = vcmask 1047556
    %v731 = vsel %vm730, %v729, %v727
    %vm732 = vcmask 130048
    %s733 = scalar_lea.vmem %s1, 8
    %734 = vst.msk [vmem:[%s733] sm:$0xff] %vm732, %v731
    %s735 = scalar_lea.vmem [#allocation0], 128
    %v736 = vld [vmem:[%s735] ss:$8 sm:$0xf]
    %s737 = scalar_lea.vmem [#allocation0], 128
    %v738 = vld [vmem:[%s737] ss:$8 sm:$0xf0]
    %vm739 = vcmask 1047556
    %v740 = vsel %vm739, %v738, %v736
    %vm741 = vcmask 130048
    %s742 = scalar_lea.vmem %s1, 16
    %743 = vst.msk [vmem:[%s742] sm:$0xff] %vm741, %v740
    %s744 = scalar_lea.vmem [#allocation0], 192
    %v745 = vld [vmem:[%s744] ss:$8 sm:$0xf]
    %s746 = scalar_lea.vmem [#allocation0], 192
    %v747 = vld [vmem:[%s746] ss:$8 sm:$0xf0]
    %vm748 = vcmask 1047556
    %v749 = vsel %vm748, %v747, %v745
    %vm750 = vcmask 130048
    %s751 = scalar_lea.vmem %s1, 24
    %752 = vst.msk [vmem:[%s751] sm:$0xff] %vm750, %v749
    %s753 = scalar_lea.vmem [#allocation0], 256
    %v754 = vld [vmem:[%s753] ss:$8 sm:$0xf]
    %s755 = scalar_lea.vmem [#allocation0], 256
    %v756 = vld [vmem:[%s755] ss:$8 sm:$0xf0]
    %vm757 = vcmask 1047556
    %v758 = vsel %vm757, %v756, %v754
    %vm759 = vcmask 130048
    %s760 = scalar_lea.vmem %s1, 32
    %761 = vst.msk [vmem:[%s760] sm:$0xff] %vm759, %v758
    %s762 = scalar_lea.vmem [#allocation0], 320
    %v763 = vld [vmem:[%s762] ss:$8 sm:$0xf]
    %s764 = scalar_lea.vmem [#allocation0], 320
    %v765 = vld [vmem:[%s764] ss:$8 sm:$0xf0]
    %vm766 = vcmask 1047556
    %v767 = vsel %vm766, %v765, %v763
    %vm768 = vcmask 130048
    %s769 = scalar_lea.vmem %s1, 40
    %770 = vst.msk [vmem:[%s769] sm:$0xff] %vm768, %v767
    %s771 = scalar_lea.vmem [#allocation0], 384
    %v772 = vld [vmem:[%s771] ss:$8 sm:$0xf]
    %s773 = scalar_lea.vmem [#allocation0], 384
    %v774 = vld [vmem:[%s773] ss:$8 sm:$0xf0]
    %vm775 = vcmask 1047556
    %v776 = vsel %vm775, %v774, %v772
    %vm777 = vcmask 130048
    %s778 = scalar_lea.vmem %s1, 48
    %779 = vst.msk [vmem:[%s778] sm:$0xff] %vm777, %v776
    %s780 = scalar_lea.vmem [#allocation0], 448
    %v781 = vld [vmem:[%s780] ss:$8 sm:$0xf]
    %s782 = scalar_lea.vmem [#allocation0], 448
    %v783 = vld [vmem:[%s782] ss:$8 sm:$0xf0]
    %vm784 = vcmask 1047556
    %v785 = vsel %vm784, %v783, %v781
    %vm786 = vcmask 130048
    %s787 = scalar_lea.vmem %s1, 56
    %788 = vst.msk [vmem:[%s787] sm:$0xff] %vm786, %v785
    %s789 = scalar_lea.vmem [#allocation0], 512
    %v790 = vld [vmem:[%s789] ss:$8 sm:$0xf]
    %s791 = scalar_lea.vmem [#allocation0], 512
    %v792 = vld [vmem:[%s791] ss:$8 sm:$0xf0]
    %vm793 = vcmask 1047556
    %v794 = vsel %vm793, %v792, %v790
    %vm795 = vcmask 130048
    %s796 = scalar_lea.vmem %s1, 64
    %797 = vst.msk [vmem:[%s796] sm:$0xff] %vm795, %v794
    %s798 = scalar_lea.vmem [#allocation0], 576
    %v799 = vld [vmem:[%s798] ss:$8 sm:$0xf]
    %s800 = scalar_lea.vmem [#allocation0], 576
    %v801 = vld [vmem:[%s800] ss:$8 sm:$0xf0]
    %vm802 = vcmask 1047556
    %v803 = vsel %vm802, %v801, %v799
    %vm804 = vcmask 130048
    %s805 = scalar_lea.vmem %s1, 72
    %806 = vst.msk [vmem:[%s805] sm:$0xff] %vm804, %v803
    %s807 = scalar_lea.vmem [#allocation0], 640
    %v808 = vld [vmem:[%s807] ss:$8 sm:$0xf]
    %s809 = scalar_lea.vmem [#allocation0], 640
    %v810 = vld [vmem:[%s809] ss:$8 sm:$0xf0]
    %vm811 = vcmask 1047556
    %v812 = vsel %vm811, %v810, %v808
    %vm813 = vcmask 130048
    %s814 = scalar_lea.vmem %s1, 80
    %815 = vst.msk [vmem:[%s814] sm:$0xff] %vm813, %v812
    %s816 = scalar_lea.vmem [#allocation0], 704
    %v817 = vld [vmem:[%s816] ss:$8 sm:$0xf]
    %s818 = scalar_lea.vmem [#allocation0], 704
    %v819 = vld [vmem:[%s818] ss:$8 sm:$0xf0]
    %vm820 = vcmask 1047556
    %v821 = vsel %vm820, %v819, %v817
    %vm822 = vcmask 130048
    %s823 = scalar_lea.vmem %s1, 88
    %824 = vst.msk [vmem:[%s823] sm:$0xff] %vm822, %v821
    %s825 = scalar_lea.vmem [#allocation0], 768
    %v826 = vld [vmem:[%s825] ss:$8 sm:$0xf]
    %s827 = scalar_lea.vmem [#allocation0], 768
    %v828 = vld [vmem:[%s827] ss:$8 sm:$0xf0]
    %vm829 = vcmask 1047556
    %v830 = vsel %vm829, %v828, %v826
    %vm831 = vcmask 130048
    %s832 = scalar_lea.vmem %s1, 96
    %833 = vst.msk [vmem:[%s832] sm:$0xff] %vm831, %v830
    %s834 = scalar_lea.vmem [#allocation0], 832
    %v835 = vld [vmem:[%s834] ss:$8 sm:$0xf]
    %s836 = scalar_lea.vmem [#allocation0], 832
    %v837 = vld [vmem:[%s836] ss:$8 sm:$0xf0]
    %vm838 = vcmask 1047556
    %v839 = vsel %vm838, %v837, %v835
    %vm840 = vcmask 130048
    %s841 = scalar_lea.vmem %s1, 104
    %842 = vst.msk [vmem:[%s841] sm:$0xff] %vm840, %v839
    %s843 = scalar_lea.vmem [#allocation0], 896
    %v844 = vld [vmem:[%s843] ss:$8 sm:$0xf]
    %s845 = scalar_lea.vmem [#allocation0], 896
    %v846 = vld [vmem:[%s845] ss:$8 sm:$0xf0]
    %vm847 = vcmask 1047556
    %v848 = vsel %vm847, %v846, %v844
    %vm849 = vcmask 130048
    %s850 = scalar_lea.vmem %s1, 112
    %851 = vst.msk [vmem:[%s850] sm:$0xff] %vm849, %v848
    %s852 = scalar_lea.vmem [#allocation0], 960
    %v853 = vld [vmem:[%s852] ss:$8 sm:$0xf]
    %s854 = scalar_lea.vmem [#allocation0], 960
    %v855 = vld [vmem:[%s854] ss:$8 sm:$0xf0]
    %vm856 = vcmask 1047556
    %v857 = vsel %vm856, %v855, %v853
    %vm858 = vcmask 130048
    %s859 = scalar_lea.vmem %s1, 120
    %860 = vst.msk [vmem:[%s859] sm:$0xff] %vm858, %v857
    %s861 = scalar_lea.vmem [#allocation0], 1024
    %v862 = vld [vmem:[%s861] ss:$8 sm:$0xf]
    %s863 = scalar_lea.vmem [#allocation0], 1024
    %v864 = vld [vmem:[%s863] ss:$8 sm:$0xf0]
    %vm865 = vcmask 1047556
    %v866 = vsel %vm865, %v864, %v862
    %vm867 = vcmask 130048
    %s868 = scalar_lea.vmem %s1, 128
    %869 = vst.msk [vmem:[%s868] sm:$0xff] %vm867, %v866
    %s870 = scalar_lea.vmem [#allocation0], 1088
    %v871 = vld [vmem:[%s870] ss:$8 sm:$0xf]
    %s872 = scalar_lea.vmem [#allocation0], 1088
    %v873 = vld [vmem:[%s872] ss:$8 sm:$0xf0]
    %vm874 = vcmask 1047556
    %v875 = vsel %vm874, %v873, %v871
    %vm876 = vcmask 130048
    %s877 = scalar_lea.vmem %s1, 136
    %878 = vst.msk [vmem:[%s877] sm:$0xff] %vm876, %v875
    %s879 = scalar_lea.vmem [#allocation0], 1
    %v880 = vld [vmem:[%s879] ss:$8 sm:$0xf]
    %s881 = scalar_lea.vmem [#allocation0], 1
    %v882 = vld [vmem:[%s881] ss:$8 sm:$0xf0]
    %vm883 = vcmask 1047556
    %v884 = vsel %vm883, %v882, %v880
    %885 = vrot.lane.b32.xlu0 %v884, 16
    %v886 = vpop.permute.xlu0 %885
    %vm887 = vcmask 261248
    %888 = vst.msk [vmem:[%s1] sm:$0xff] %vm887, %v886
    %s889 = scalar_lea.vmem [#allocation0], 257
    %v890 = vld [vmem:[%s889] ss:$8 sm:$0xf]
    %s891 = scalar_lea.vmem [#allocation0], 257
    %v892 = vld [vmem:[%s891] ss:$8 sm:$0xf0]
    %vm893 = vcmask 1047556
    %v894 = vsel %vm893, %v892, %v890
    %895 = vrot.lane.b32.xlu0 %v894, 16
    %v896 = vpop.permute.xlu0 %895
    %vm897 = vcmask 261248
    %s898 = scalar_lea.vmem %s1, 32
    %899 = vst.msk [vmem:[%s898] sm:$0xff] %vm897, %v896
    %s900 = scalar_lea.vmem [#allocation0], 513
    %v901 = vld [vmem:[%s900] ss:$8 sm:$0xf]
    %s902 = scalar_lea.vmem [#allocation0], 513
    %v903 = vld [vmem:[%s902] ss:$8 sm:$0xf0]
    %vm904 = vcmask 1047556
    %v905 = vsel %vm904, %v903, %v901
    %906 = vrot.lane.b32.xlu0 %v905, 16
    %v907 = vpop.permute.xlu0 %906
    %vm908 = vcmask 261248
    %s909 = scalar_lea.vmem %s1, 64
    %910 = vst.msk [vmem:[%s909] sm:$0xff] %vm908, %v907
    %s911 = scalar_lea.vmem [#allocation0], 769
    %v912 = vld [vmem:[%s911] ss:$8 sm:$0xf]
    %s913 = scalar_lea.vmem [#allocation0], 769
    %v914 = vld [vmem:[%s913] ss:$8 sm:$0xf0]
    %vm915 = vcmask 1047556
    %v916 = vsel %vm915, %v914, %v912
    %917 = vrot.lane.b32.xlu0 %v916, 16
    %v918 = vpop.permute.xlu0 %917
    %vm919 = vcmask 261248
    %s920 = scalar_lea.vmem %s1, 96
    %921 = vst.msk [vmem:[%s920] sm:$0xff] %vm919, %v918
    %s922 = scalar_lea.vmem [#allocation0], 1025
    %v923 = vld [vmem:[%s922] ss:$8 sm:$0xf]
    %s924 = scalar_lea.vmem [#allocation0], 1025
    %v925 = vld [vmem:[%s924] ss:$8 sm:$0xf0]
    %vm926 = vcmask 1047556
    %v927 = vsel %vm926, %v925, %v923
    %928 = vrot.lane.b32.xlu0 %v927, 16
    %v929 = vpop.permute.xlu0 %928
    %vm930 = vcmask 261248
    %s931 = scalar_lea.vmem %s1, 128
    %932 = vst.msk [vmem:[%s931] sm:$0xff] %vm930, %v929
    %s933 = scalar_lea.vmem [#allocation0], 65
    %v934 = vld [vmem:[%s933] ss:$8 sm:$0xf]
    %s935 = scalar_lea.vmem [#allocation0], 65
    %v936 = vld [vmem:[%s935] ss:$8 sm:$0xf0]
    %vm937 = vcmask 1047556
    %v938 = vsel %vm937, %v936, %v934
    %939 = vrot.lane.b32.xlu0 %v938, 16
    %v940 = vpop.permute.xlu0 %939
    %vm941 = vcmask 261248
    %s942 = scalar_lea.vmem %s1, 8
    %943 = vst.msk [vmem:[%s942] sm:$0xff] %vm941, %v940
    %s944 = scalar_lea.vmem [#allocation0], 321
    %v945 = vld [vmem:[%s944] ss:$8 sm:$0xf]
    %s946 = scalar_lea.vmem [#allocation0], 321
    %v947 = vld [vmem:[%s946] ss:$8 sm:$0xf0]
    %vm948 = vcmask 1047556
    %v949 = vsel %vm948, %v947, %v945
    %950 = vrot.lane.b32.xlu0 %v949, 16
    %v951 = vpop.permute.xlu0 %950
    %vm952 = vcmask 261248
    %s953 = scalar_lea.vmem %s1, 40
    %954 = vst.msk [vmem:[%s953] sm:$0xff] %vm952, %v951
    %s955 = scalar_lea.vmem [#allocation0], 577
    %v956 = vld [vmem:[%s955] ss:$8 sm:$0xf]
    %s957 = scalar_lea.vmem [#allocation0], 577
    %v958 = vld [vmem:[%s957] ss:$8 sm:$0xf0]
    %vm959 = vcmask 1047556
    %v960 = vsel %vm959, %v958, %v956
    %961 = vrot.lane.b32.xlu0 %v960, 16
    %v962 = vpop.permute.xlu0 %961
    %vm963 = vcmask 261248
    %s964 = scalar_lea.vmem %s1, 72
    %965 = vst.msk [vmem:[%s964] sm:$0xff] %vm963, %v962
    %s966 = scalar_lea.vmem [#allocation0], 833
    %v967 = vld [vmem:[%s966] ss:$8 sm:$0xf]
    %s968 = scalar_lea.vmem [#allocation0], 833
    %v969 = vld [vmem:[%s968] ss:$8 sm:$0xf0]
    %vm970 = vcmask 1047556
    %v971 = vsel %vm970, %v969, %v967
    %972 = vrot.lane.b32.xlu0 %v971, 16
    %v973 = vpop.permute.xlu0 %972
    %vm974 = vcmask 261248
    %s975 = scalar_lea.vmem %s1, 104
    %976 = vst.msk [vmem:[%s975] sm:$0xff] %vm974, %v973
    %s977 = scalar_lea.vmem [#allocation0], 1089
    %v978 = vld [vmem:[%s977] ss:$8 sm:$0xf]
    %s979 = scalar_lea.vmem [#allocation0], 1089
    %v980 = vld [vmem:[%s979] ss:$8 sm:$0xf0]
    %vm981 = vcmask 1047556
    %v982 = vsel %vm981, %v980, %v978
    %983 = vrot.lane.b32.xlu0 %v982, 16
    %v984 = vpop.permute.xlu0 %983
    %vm985 = vcmask 261248
    %s986 = scalar_lea.vmem %s1, 136
    %987 = vst.msk [vmem:[%s986] sm:$0xff] %vm985, %v984
    %s988 = scalar_lea.vmem [#allocation0], 129
    %v989 = vld [vmem:[%s988] ss:$8 sm:$0xf]
    %s990 = scalar_lea.vmem [#allocation0], 129
    %v991 = vld [vmem:[%s990] ss:$8 sm:$0xf0]
    %vm992 = vcmask 1047556
    %v993 = vsel %vm992, %v991, %v989
    %994 = vrot.lane.b32.xlu0 %v993, 16
    %v995 = vpop.permute.xlu0 %994
    %vm996 = vcmask 261248
    %s997 = scalar_lea.vmem %s1, 16
    %998 = vst.msk [vmem:[%s997] sm:$0xff] %vm996, %v995
    %s999 = scalar_lea.vmem [#allocation0], 385
    %v1000 = vld [vmem:[%s999] ss:$8 sm:$0xf]
    %s1001 = scalar_lea.vmem [#allocation0], 385
    %v1002 = vld [vmem:[%s1001] ss:$8 sm:$0xf0]
    %vm1003 = vcmask 1047556
    %v1004 = vsel %vm1003, %v1002, %v1000
    %1005 = vrot.lane.b32.xlu0 %v1004, 16
    %v1006 = vpop.permute.xlu0 %1005
    %vm1007 = vcmask 261248
    %s1008 = scalar_lea.vmem %s1, 48
    %1009 = vst.msk [vmem:[%s1008] sm:$0xff] %vm1007, %v1006
    %s1010 = scalar_lea.vmem [#allocation0], 641
    %v1011 = vld [vmem:[%s1010] ss:$8 sm:$0xf]
    %s1012 = scalar_lea.vmem [#allocation0], 641
    %v1013 = vld [vmem:[%s1012] ss:$8 sm:$0xf0]
    %vm1014 = vcmask 1047556
    %v1015 = vsel %vm1014, %v1013, %v1011
    %1016 = vrot.lane.b32.xlu0 %v1015, 16
    %v1017 = vpop.permute.xlu0 %1016
    %vm1018 = vcmask 261248
    %s1019 = scalar_lea.vmem %s1, 80
    %1020 = vst.msk [vmem:[%s1019] sm:$0xff] %vm1018, %v1017
    %s1021 = scalar_lea.vmem [#allocation0], 897
    %v1022 = vld [vmem:[%s1021] ss:$8 sm:$0xf]
    %s1023 = scalar_lea.vmem [#allocation0], 897
    %v1024 = vld [vmem:[%s1023] ss:$8 sm:$0xf0]
    %vm1025 = vcmask 1047556
    %v1026 = vsel %vm1025, %v1024, %v1022
    %1027 = vrot.lane.b32.xlu0 %v1026, 16
    %v1028 = vpop.permute.xlu0 %1027
    %vm1029 = vcmask 261248
    %s1030 = scalar_lea.vmem %s1, 112
    %1031 = vst.msk [vmem:[%s1030] sm:$0xff] %vm1029, %v1028
    %s1032 = scalar_lea.vmem [#allocation0], 193
    %v1033 = vld [vmem:[%s1032] ss:$8 sm:$0xf]
    %s1034 = scalar_lea.vmem [#allocation0], 193
    %v1035 = vld [vmem:[%s1034] ss:$8 sm:$0xf0]
    %vm1036 = vcmask 1047556
    %v1037 = vsel %vm1036, %v1035, %v1033
    %1038 = vrot.lane.b32.xlu0 %v1037, 16
    %v1039 = vpop.permute.xlu0 %1038
    %vm1040 = vcmask 261248
    %s1041 = scalar_lea.vmem %s1, 24
    %1042 = vst.msk [vmem:[%s1041] sm:$0xff] %vm1040, %v1039
    %s1043 = scalar_lea.vmem [#allocation0], 449
    %v1044 = vld [vmem:[%s1043] ss:$8 sm:$0xf]
    %s1045 = scalar_lea.vmem [#allocation0], 449
    %v1046 = vld [vmem:[%s1045] ss:$8 sm:$0xf0]
    %vm1047 = vcmask 1047556
    %v1048 = vsel %vm1047, %v1046, %v1044
    %1049 = vrot.lane.b32.xlu0 %v1048, 16
    %v1050 = vpop.permute.xlu0 %1049
    %vm1051 = vcmask 261248
    %s1052 = scalar_lea.vmem %s1, 56
    %1053 = vst.msk [vmem:[%s1052] sm:$0xff] %vm1051, %v1050
    %s1054 = scalar_lea.vmem [#allocation0], 705
    %v1055 = vld [vmem:[%s1054] ss:$8 sm:$0xf]
    %s1056 = scalar_lea.vmem [#allocation0], 705
    %v1057 = vld [vmem:[%s1056] ss:$8 sm:$0xf0]
    %vm1058 = vcmask 1047556
    %v1059 = vsel %vm1058, %v1057, %v1055
    %1060 = vrot.lane.b32.xlu0 %v1059, 16
    %v1061 = vpop.permute.xlu0 %1060
    %vm1062 = vcmask 261248
    %s1063 = scalar_lea.vmem %s1, 88
    %1064 = vst.msk [vmem:[%s1063] sm:$0xff] %vm1062, %v1061
    %s1065 = scalar_lea.vmem [#allocation0], 961
    %v1066 = vld [vmem:[%s1065] ss:$8 sm:$0xf]
    %s1067 = scalar_lea.vmem [#allocation0], 961
    %v1068 = vld [vmem:[%s1067] ss:$8 sm:$0xf0]
    %vm1069 = vcmask 1047556
    %v1070 = vsel %vm1069, %v1068, %v1066
    %1071 = vrot.lane.b32.xlu0 %v1070, 16
    %v1072 = vpop.permute.xlu0 %1071
    %vm1073 = vcmask 261248
    %s1074 = scalar_lea.vmem %s1, 120
    %1075 = vst.msk [vmem:[%s1074] sm:$0xff] %vm1073, %v1072

// kernel: multi_viewer_forward.5
$region0: #{multi_viewer_forward.5}
  #allocation0 [shape = 'u32[]', space=smem, size = 0x4, offset = 0x4, fixed_abs, tag = 'smem constant byte address 0x4 - core index']
  #allocation1 [shape = 'u32[144,128]{1,0:T(1,128)}', space=vmem, size = 0x12000, scoped, tag = 'internal scratch']
  #allocation2 [shape = 'f32[1]{0:T(128)S(6)}', space=smem, size = 0x200, scoped, tag = 'scoped memory for multi_viewer_forward.5']
  %s0 = inlined_call_operand.<no memory space> [shape: f32[1], index: 0, kind: input, shape index: {}]
  %s1 = inlined_call_operand.vmem [shape: bf16[256,40], index: 1, kind: input, shape index: {}]
  %s2 = inlined_call_operand.vmem [shape: bf16[40,256], index: 2, kind: input, shape index: {}]
  %s3 = inlined_call_operand.vmem [shape: bf16[128,128], index: 3, kind: input, shape index: {}]
  %s4 = inlined_call_operand.vmem [shape: f32[1,128], index: 4, kind: input, shape index: {}]
  %s5 = inlined_call_operand.vmem [shape: f32[1,128], index: 5, kind: input, shape index: {}]
  %s6 = inlined_call_operand.vmem [shape: bf16[256,128], index: 6, kind: output, shape index: {}]
  %s7 = sld [smem:[#allocation0]]
  $region57: #{multi_viewer_forward.5} parent=0
    _
  %s9 = ssub.s32 1, %s7
  %s10 = scalar_select 0, %s9, %s7
  %11 = sst [smem:[#allocation2]] %s0
  loop: start=0, step=1, limit=4
  $region2: #{multi_viewer_forward.5} parent=0 // loop_pre_header
    _
  $region3: #{multi_viewer_forward.5} parent=0 // loop_header
    %s13 = sphi 0, %s17
    %p14 = scmp.ge.s32.totalorder %s13, 4
    %s21 = sphi 0, %s21
    %s23 = sphi 0, %s21
    %s24 = sphi 0, %s23
    %s38 = sphi 0, %s24
    %s44 = sphi 0, %s46
    %s47 = sphi 0, %s44
    %s48 = sphi 0, %s47
    %s64 = sphi 0, %s48
    %s68 = sphi 0, %s68
    %s70 = sphi 0, %s68
    %s71 = sphi 0, %s70
    %s85 = sphi 0, %s71
    %s89 = sphi 0, %s89
    %s91 = sphi 0, %s89
    %s92 = sphi 0, %s91
    %s106 = sphi 0, %s92
    %s110 = sphi 0, %s110
    %s112 = sphi 0, %s110
    %s113 = sphi 0, %s112
    %s127 = sphi 0, %s113
    %s131 = sphi 0, %s131
    %s133 = sphi 0, %s131
    %s134 = sphi 0, %s133
    %s148 = sphi 0, %s134
    %s154 = sphi 0, %s156
    %s157 = sphi 0, %s154
    %s158 = sphi 0, %s157
    %s174 = sphi 0, %s158
  $region4: #{multi_viewer_forward.5} parent=0 // loop_header_branch
    %16 = sbr.rel (%p14) target = $region8
  $region5: #{multi_viewer_forward.5} parent=0 // loop_body
    %s18 = ssub.s32 %s13, 1
    %s19 = ssub.s32 %s13, 2
    %s20 = sadd.s32 %s13, 1
    %s22 = sadd.s32 %s21, 1
    %p25 = scmp.eq.s32.totalorder %s13, 1
    %p26 = scmp.ne.s32.totalorder %s21, %s23
    %p27 = scmp.eq.s32.totalorder %s13, 0
    %p28 = por %p26, %p27
    %p29 = scmp.ne.s32.totalorder %s21, %s23
    %p30 = scmp.eq.s32.totalorder %s18, 1
    %p31 = por %p29, %p30
    %p32 = scmp.ne.s32.totalorder %s23, %s24
    %p33 = scmp.eq.s32.totalorder %s18, 0
    %p34 = por %p32, %p33
    %p35 = scmp.ne.s32.totalorder %s23, %s24
    %p36 = scmp.eq.s32.totalorder %s19, 1
    %p37 = por %p35, %p36
    %p39 = scmp.ne.s32.totalorder %s24, %s38
    %p40 = scmp.eq.s32.totalorder %s19, 0
    %p41 = por %p39, %p40
    %s42 = ssub.s32 %s13, %s20
    %p43 = scmp.eq.s32.totalorder %s42, 0
    %s45 = sadd.s32 %s44, 1
    %s46 = scalar_select %p43, %s44, %s45
    %p49 = pneg %p43
    %p50 = scmp.eq.s32.totalorder %s13, 1
    %p51 = por %p49, %p50
    %p52 = scmp.ne.s32.totalorder %s44, %s47
    %p53 = scmp.eq.s32.totalorder %s13, 0
    %p54 = por %p52, %p53
    %p55 = scmp.ne.s32.totalorder %s44, %s47
    %p56 = scmp.eq.s32.totalorder %s18, 1
    %p57 = por %p55, %p56
    %p58 = scmp.ne.s32.totalorder %s47, %s48
    %p59 = scmp.eq.s32.totalorder %s18, 0
    %p60 = por %p58, %p59
    %p61 = scmp.ne.s32.totalorder %s47, %s48
    %p62 = scmp.eq.s32.totalorder %s19, 1
    %p63 = por %p61, %p62
    %p65 = scmp.ne.s32.totalorder %s48, %s64
    %p66 = scmp.eq.s32.totalorder %s19, 0
    %p67 = por %p65, %p66
    %s69 = sadd.s32 %s68, 1
    %p72 = scmp.eq.s32.totalorder %s13, 1
    %p73 = scmp.ne.s32.totalorder %s68, %s70
    %p74 = scmp.eq.s32.totalorder %s13, 0
    %p75 = por %p73, %p74
    %p76 = scmp.ne.s32.totalorder %s68, %s70
    %p77 = scmp.eq.s32.totalorder %s18, 1
    %p78 = por %p76, %p77
    %p79 = scmp.ne.s32.totalorder %s70, %s71
    %p80 = scmp.eq.s32.totalorder %s18, 0
    %p81 = por %p79, %p80
    %p82 = scmp.ne.s32.totalorder %s70, %s71
    %p83 = scmp.eq.s32.totalorder %s19, 1
    %p84 = por %p82, %p83
    %p86 = scmp.ne.s32.totalorder %s71, %s85
    %p87 = scmp.eq.s32.totalorder %s19, 0
    %p88 = por %p86, %p87
    %s90 = sadd.s32 %s89, 1
    %p93 = scmp.eq.s32.totalorder %s13, 1
    %p94 = scmp.ne.s32.totalorder %s89, %s91
    %p95 = scmp.eq.s32.totalorder %s13, 0
    %p96 = por %p94, %p95
    %p97 = scmp.ne.s32.totalorder %s89, %s91
    %p98 = scmp.eq.s32.totalorder %s18, 1
    %p99 = por %p97, %p98
    %p100 = scmp.ne.s32.totalorder %s91, %s92
    %p101 = scmp.eq.s32.totalorder %s18, 0
    %p102 = por %p100, %p101
    %p103 = scmp.ne.s32.totalorder %s91, %s92
    %p104 = scmp.eq.s32.totalorder %s19, 1
    %p105 = por %p103, %p104
    %p107 = scmp.ne.s32.totalorder %s92, %s106
    %p108 = scmp.eq.s32.totalorder %s19, 0
    %p109 = por %p107, %p108
    %s111 = sadd.s32 %s110, 1
    %p114 = scmp.eq.s32.totalorder %s13, 1
    %p115 = scmp.ne.s32.totalorder %s110, %s112
    %p116 = scmp.eq.s32.totalorder %s13, 0
    %p117 = por %p115, %p116
    %p118 = scmp.ne.s32.totalorder %s110, %s112
    %p119 = scmp.eq.s32.totalorder %s18, 1
    %p120 = por %p118, %p119
    %p121 = scmp.ne.s32.totalorder %s112, %s113
    %p122 = scmp.eq.s32.totalorder %s18, 0
    %p123 = por %p121, %p122
    %p124 = scmp.ne.s32.totalorder %s112, %s113
    %p125 = scmp.eq.s32.totalorder %s19, 1
    %p126 = por %p124, %p125
    %p128 = scmp.ne.s32.totalorder %s113, %s127
    %p129 = scmp.eq.s32.totalorder %s19, 0
    %p130 = por %p128, %p129
    %s132 = sadd.s32 %s131, 1
    %p135 = scmp.eq.s32.totalorder %s13, 1
    %p136 = scmp.ne.s32.totalorder %s131, %s133
    %p137 = scmp.eq.s32.totalorder %s13, 0
    %p138 = por %p136, %p137
    %p139 = scmp.ne.s32.totalorder %s131, %s133
    %p140 = scmp.eq.s32.totalorder %s18, 1
    %p141 = por %p139, %p140
    %p142 = scmp.ne.s32.totalorder %s133, %s134
    %p143 = scmp.eq.s32.totalorder %s18, 0
    %p144 = por %p142, %p143
    %p145 = scmp.ne.s32.totalorder %s133, %s134
    %p146 = scmp.eq.s32.totalorder %s19, 1
    %p147 = por %p145, %p146
    %p149 = scmp.ne.s32.totalorder %s134, %s148
    %p150 = scmp.eq.s32.totalorder %s19, 0
    %p151 = por %p149, %p150
    %s152 = ssub.s32 %s13, %s20
    %p153 = scmp.eq.s32.totalorder %s152, 0
    %s155 = sadd.s32 %s154, 1
    %s156 = scalar_select %p153, %s154, %s155
    %p159 = pneg %p153
    %p160 = scmp.eq.s32.totalorder %s13, 1
    %p161 = por %p159, %p160
    %p162 = scmp.ne.s32.totalorder %s154, %s157
    %p163 = scmp.eq.s32.totalorder %s13, 0
    %p164 = por %p162, %p163
    %p165 = scmp.ne.s32.totalorder %s154, %s157
    %p166 = scmp.eq.s32.totalorder %s18, 1
    %p167 = por %p165, %p166
    %p168 = scmp.ne.s32.totalorder %s157, %s158
    %p169 = scmp.eq.s32.totalorder %s18, 0
    %p170 = por %p168, %p169
    %p171 = scmp.ne.s32.totalorder %s157, %s158
    %p172 = scmp.eq.s32.totalorder %s19, 1
    %p173 = por %p171, %p172
    %p175 = scmp.ne.s32.totalorder %s158, %s174
    %p176 = scmp.eq.s32.totalorder %s19, 0
    %p177 = por %p175, %p176
    %p178 = scmp.le.s32.totalorder 1, %s13
    %p179 = scmp.lt.s32.totalorder %s13, 3
    %p180 = pnand %p178, %p179
    %p181 = pneg %p180
    // Predicated region
    $region9: #{multi_viewer_forward.5} parent=5 // pred_check
      _
    $region10: #{multi_viewer_forward.5} parent=5 // pred_check_branch
      %183 = sbr.rel (%p180) target = $region12
    $region11: #{multi_viewer_forward.5} parent=5 // pred_region
      %s184 = ssub.s32 %s13, 1
      // Predicated region
      $region13: #{multi_viewer_forward.5} parent=11 // pred_check
        %p185 = pneg %p34
      $region14: #{multi_viewer_forward.5} parent=11 // pred_check_branch
        %187 = sbr.rel (%p185) target = $region16
      $region15: #{multi_viewer_forward.5} parent=11 // pred_region
        _
      $region16: #{multi_viewer_forward.5} parent=11 // pred_fallthru
        _
      // Predicated region
      $region17: #{multi_viewer_forward.5} parent=11 // pred_check
        %p188 = pneg %p81
      $region18: #{multi_viewer_forward.5} parent=11 // pred_check_branch
        %190 = sbr.rel (%p188) target = $region20
      $region19: #{multi_viewer_forward.5} parent=11 // pred_region
        _
      $region20: #{multi_viewer_forward.5} parent=11 // pred_fallthru
        _
      // Predicated region
      $region21: #{multi_viewer_forward.5} parent=11 // pred_check
        %p191 = pneg %p102
      $region22: #{multi_viewer_forward.5} parent=11 // pred_check_branch
        %193 = sbr.rel (%p191) target = $region24
      $region23: #{multi_viewer_forward.5} parent=11 // pred_region
        _
      $region24: #{multi_viewer_forward.5} parent=11 // pred_fallthru
        _
      // Predicated region
      $region25: #{multi_viewer_forward.5} parent=11 // pred_check
        %p194 = pneg %p123
      $region26: #{multi_viewer_forward.5} parent=11 // pred_check_branch
        %196 = sbr.rel (%p194) target = $region28
      $region27: #{multi_viewer_forward.5} parent=11 // pred_region
        _
      $region28: #{multi_viewer_forward.5} parent=11 // pred_fallthru
        _
      // Predicated region
      $region29: #{multi_viewer_forward.5} parent=11 // pred_check
        %p197 = pneg %p144
      $region30: #{multi_viewer_forward.5} parent=11 // pred_check_branch
        %199 = sbr.rel (%p197) target = $region32
      $region31: #{multi_viewer_forward.5} parent=11 // pred_region
        _
      $region32: #{multi_viewer_forward.5} parent=11 // pred_fallthru
        _
    $region12: #{multi_viewer_forward.5} parent=5 // pred_fallthru
      _
    %p200 = scmp.lt.s32.totalorder %s13, 2
    // Predicated region
    $region33: #{multi_viewer_forward.5} parent=5 // pred_check
      %p201 = pneg %p200
    $region34: #{multi_viewer_forward.5} parent=5 // pred_check_branch
      %203 = sbr.rel (%p201) target = $region36
    $region35: #{multi_viewer_forward.5} parent=5 // pred_region
      // Predicated region
      $region37: #{multi_viewer_forward.5} parent=35 // pred_check
        %p204 = pneg %p54
      $region38: #{multi_viewer_forward.5} parent=35 // pred_check_branch
        %206 = sbr.rel (%p204) target = $region40
      $region39: #{multi_viewer_forward.5} parent=35 // pred_region
        %s207 = smul.u32 16, %s13
        %p208 = scmp.lt.s32.totalorder %s207, 31
        %s209 = scalar_select %p208, %s207, 31
        %s210 = smul.addr %s209, 4
        %s211 = scalar_lea.vmem %s1, %s210
        %s212 = smul.u32 16, %s13
      $region40: #{multi_viewer_forward.5} parent=35 // pred_fallthru
        _
    $region36: #{multi_viewer_forward.5} parent=5 // pred_fallthru
      _
    %p213 = scmp.le.s32.totalorder 1, %s13
    %p214 = scmp.lt.s32.totalorder %s13, 3
    %p215 = pnand %p213, %p214
    %p216 = pneg %p215
    // Predicated region
    $region41: #{multi_viewer_forward.5} parent=5 // pred_check
      _
    $region42: #{multi_viewer_forward.5} parent=5 // pred_check_branch
      %218 = sbr.rel (%p215) target = $region44
    $region43: #{multi_viewer_forward.5} parent=5 // pred_region
      %s219 = ssub.s32 %s13, 1
      %p220 = pneg %p34
      %p221 = pneg %p31
      %s222 = smul.u32 16, %s18
      %p223 = scmp.lt.s32.totalorder %s222, 31
      %s224 = scalar_select %p223, %s222, 31
      %s225 = smul.addr %s224, 4
      %s226 = scalar_lea.vmem %s1, %s225
      %p227 = pneg %p60
      %p228 = pneg %p57
      %p229 = pneg %p81
      %p230 = pneg %p78
      %p231 = pneg %p102
      %p232 = pneg %p99
      %p233 = pneg %p123
      %p234 = pneg %p120
      %p235 = pneg %p144
      %p236 = pneg %p141
      %p237 = pneg %p170
      %p238 = pneg %p167
      %s239 = smul.u32 16, %s18
      %p240 = scmp.lt.s32.totalorder %s239, 31
      %s241 = scalar_select %p240, %s239, 31
      %s242 = smul.addr %s241, 4
      %s243 = scalar_lea.vmem %s6, %s242
      %s244 = smul.u32 16, %s18
      %p245 = scmp.lt.s32.totalorder %s244, 31
      %s246 = scalar_select %p245, %s244, 31
      %s247 = smul.addr %s246, 4
      %s248 = scalar_lea.vmem %s1, %s247
      %s249 = smul.u32 16, %s18
      %s250 = smul.u32 16, %s18
      %p251 = scmp.lt.s32.totalorder %s250, 31
      %s252 = scalar_select %p251, %s250, 31
      %s253 = smul.addr %s252, 4
      %s254 = scalar_lea.vmem %s6, %s253
      %s255 = smul.u32 16, %s18
      %s257 = sld [smem:[#allocation2]]
      %v258 = vld [vmem:[%s248] sm:$0xf]
      %v259 = vld [vmem:[%s248 + $0x4] sm:$0xf]
      %v260 = vld [vmem:[%s248 + $0x8] sm:$0xf]
      %v261 = vld [vmem:[%s248 + $0xc] sm:$0xf]
      %v262 = vld [vmem:[%s248 + $0x10] sm:$0xf]
      %v263 = vld [vmem:[%s248 + $0x14] sm:$0xf]
      %v264 = vld [vmem:[%s248 + $0x18] sm:$0xf]
      %v265 = vld [vmem:[%s248 + $0x1c] sm:$0xf]
      %v266 = vld [vmem:[%s248 + $0x20] sm:$0xf]
      %v267 = vld [vmem:[%s248 + $0x24] sm:$0xf]
      %v268 = vld [vmem:[%s248 + $0x28] sm:$0xf]
      %v269 = vld [vmem:[%s248 + $0x2c] sm:$0xf]
      %v270 = vld [vmem:[%s248 + $0x30] sm:$0xf]
      %v271 = vld [vmem:[%s248 + $0x34] sm:$0xf]
      %v272 = vld [vmem:[%s248 + $0x38] sm:$0xf]
      %v273 = vld [vmem:[%s248 + $0x3c] sm:$0xf]
      %v274 = vld [vmem:[%s2] sm:$0xff]
      %v275 = vld [vmem:[%s2 + $0x8] sm:$0xff]
      %v276 = vld [vmem:[%s2 + $0x10] sm:$0xff]
      %v277 = vld [vmem:[%s2 + $0x18] sm:$0xff]
      %v278 = vld [vmem:[%s2 + $0x20] sm:$0xff]
      %v295 = vunpack.c.l.b16 %v258
      %v296 = vunpack.c.l.b16 %v259
      %v297 = vunpack.c.l.b16 %v260
      %v298 = vunpack.c.l.b16 %v261
      %v299 = vunpack.c.l.b16 %v262
      %v300 = vunpack.c.l.b16 %v263
      %v301 = vunpack.c.l.b16 %v264
      %v302 = vunpack.c.l.b16 %v265
      %v303 = vunpack.c.l.b16 %v266
      %v304 = vunpack.c.l.b16 %v267
      %v305 = vunpack.c.l.b16 %v268
      %v306 = vunpack.c.l.b16 %v269
      %v307 = vunpack.c.l.b16 %v270
      %v308 = vunpack.c.l.b16 %v271
      %v309 = vunpack.c.l.b16 %v272
      %v310 = vunpack.c.l.b16 %v273
      %v311 = vpack.c.b16 %v296, %v295
      %v312 = vpack.c.b16 %v298, %v297
      %v313 = vpack.c.b16 %v300, %v299
      %v314 = vpack.c.b16 %v302, %v301
      %v315 = vpack.c.b16 %v304, %v303
      %v316 = vpack.c.b16 %v306, %v305
      %v317 = vpack.c.b16 %v308, %v307
      %v318 = vpack.c.b16 %v310, %v309
      %v324 = vunpack.c.l.b16 %v274
      %v325 = vunpack.c.h.b16 %v274
      %v326 = vunpack.c.l.b16 %v275
      %v327 = vunpack.c.h.b16 %v275
      %v328 = vunpack.c.l.b16 %v276
      %v329 = vunpack.c.h.b16 %v276
      %v330 = vunpack.c.l.b16 %v277
      %v331 = vunpack.c.h.b16 %v277
      %v332 = vunpack.c.l.b16 %v278
      %v333 = vunpack.c.h.b16 %v278
      %v334 = vpack.c.b16 %v326, %v324
      %v335 = vpack.c.b16 %v327, %v325
      %v336 = vpack.c.b16 %v330, %v328
      %v337 = vpack.c.b16 %v331, %v329
      %v338 = vpack.c.b16 %v332, %v332
      %v339 = vpack.c.b16 %v333, %v333
      %vm344 = vcmask 326656
      %v346 = vsel %vm344, %v311, 0
      %v349 = vsel %vm344, %v312, 0
      %v352 = vsel %vm344, %v313, 0
      %v355 = vsel %vm344, %v314, 0
      %v358 = vsel %vm344, %v315, 0
      %v361 = vsel %vm344, %v316, 0
      %v364 = vsel %vm344, %v317, 0
      %v367 = vsel %vm344, %v318, 0
      %vm369 = vcmask 1043456
      %v371 = vsel %vm369, %v338, 0
      %v374 = vsel %vm369, %v339, 0
      %376 = vmatprep.subr.bf16.mxu0 %v335
      %377 = vmatpush1.bf16.msra.mxu0 %v334
      %378 = vmatprep.subr.bf16.mxu0 %v337
      %379 = vmatpush1.bf16.msra.mxu0 %v336
      %380 = vmatprep.subr.bf16.mxu0 %v374
      %381 = vmatpush1.bf16.msra.mxu0 %v371
      %382 = vmatprep.subr.bf16.mxu0 0
      %383 = vmatpush1.bf16.msra.mxu0 0
      %384 = vmatprep.subr.bf16.mxu0 0
      %385 = vmatpush1.bf16.msra.mxu0 0
      %386 = vmatprep.subr.bf16.mxu0 0
      %387 = vmatpush1.bf16.msra.mxu0 0
      %388 = vmatprep.subr.bf16.mxu0 0
      %389 = vmatpush1.bf16.msra.mxu0 0
      %390 = vmatprep.subr.bf16.mxu0 0
      %391 = vmatpush1.bf16.msra.mxu0 0
      %392 = vmatprep.subr.bf16.mxu0 0
      %393 = vmatpush1.bf16.msra.mxu0 0
      %394 = vmatprep.subr.bf16.mxu0 0
      %395 = vmatpush1.bf16.msra.mxu0 0
      %396 = vmatprep.subr.bf16.mxu0 0
      %397 = vmatpush1.bf16.msra.mxu0 0
      %398 = vmatprep.subr.bf16.mxu0 0
      %399 = vmatpush1.bf16.msra.mxu0 0
      %400 = vmatprep.subr.bf16.mxu0 0
      %401 = vmatpush1.bf16.msra.mxu0 0
      %402 = vmatprep.subr.bf16.mxu0 0
      %403 = vmatpush1.bf16.msra.mxu0 0
      %404 = vmatprep.subr.bf16.mxu0 0
      %405 = vmatpush1.bf16.msra.mxu0 0
      %406 = vmatprep.subr.bf16.mxu0 0
      %407 = vmatpush1.bf16.msra.mxu0 0
      %408 = vmatprep.mubr.bf16.mxu0 0
      %409 = vmatmul.mubr.bf16.gmra.mrb[0].mxu0 %v346
      %v410 = vpop.f32.mrb[0].mxu0
      %v411 = vadd.f32 0.0, %v410
      %v412 = vpop.f32.mrb[0].mxu0
      %v413 = vadd.f32 0.0, %v412
      %v414 = vpop.f32.mrb[0].mxu0
      %v415 = vadd.f32 0.0, %v414
      %v416 = vpop.f32.mrb[0].mxu0
      %v417 = vadd.f32 0.0, %v416
      %418 = vmatprep.mubr.bf16.mxu0 0
      %419 = vmatmul.mubr.bf16.gmra.mrb[0].mxu0 %v349
      %v420 = vpop.f32.mrb[0].mxu0
      %v421 = vadd.f32 0.0, %v420
      %v422 = vpop.f32.mrb[0].mxu0
      %v423 = vadd.f32 0.0, %v422
      %v424 = vpop.f32.mrb[0].mxu0
      %v425 = vadd.f32 0.0, %v424
      %v426 = vpop.f32.mrb[0].mxu0
      %v427 = vadd.f32 0.0, %v426
      %428 = vmatprep.mubr.bf16.mxu0 0
      %429 = vmatmul.mubr.bf16.gmra.mrb[0].mxu0 %v352
      %v430 = vpop.f32.mrb[0].mxu0
      %v431 = vadd.f32 0.0, %v430
      %v432 = vpop.f32.mrb[0].mxu0
      %v433 = vadd.f32 0.0, %v432
      %v434 = vpop.f32.mrb[0].mxu0
      %v435 = vadd.f32 0.0, %v434
      %v436 = vpop.f32.mrb[0].mxu0
      %v437 = vadd.f32 0.0, %v436
      %438 = vmatprep.mubr.bf16.mxu0 0
      %439 = vmatmul.mubr.bf16.gmra.mrb[0].mxu0 %v355
      %v440 = vpop.f32.mrb[0].mxu0
      %v441 = vadd.f32 0.0, %v440
      %v442 = vpop.f32.mrb[0].mxu0
      %v443 = vadd.f32 0.0, %v442
      %v444 = vpop.f32.mrb[0].mxu0
      %v445 = vadd.f32 0.0, %v444
      %v446 = vpop.f32.mrb[0].mxu0
      %v447 = vadd.f32 0.0, %v446
      %448 = vmatprep.mubr.bf16.mxu0 0
      %449 = vmatmul.mubr.bf16.gmra.mrb[0].mxu0 %v358
      %v450 = vpop.f32.mrb[0].mxu0
      %v451 = vadd.f32 0.0, %v450
      %v452 = vpop.f32.mrb[0].mxu0
      %v453 = vadd.f32 0.0, %v452
      %v454 = vpop.f32.mrb[0].mxu0
      %v455 = vadd.f32 0.0, %v454
      %v456 = vpop.f32.mrb[0].mxu0
      %v457 = vadd.f32 0.0, %v456
      %458 = vmatprep.mubr.bf16.mxu0 0
      %459 = vmatmul.mubr.bf16.gmra.mrb[0].mxu0 %v361
      %v460 = vpop.f32.mrb[0].mxu0
      %v461 = vadd.f32 0.0, %v460
      %v462 = vpop.f32.mrb[0].mxu0
      %v463 = vadd.f32 0.0, %v462
      %v464 = vpop.f32.mrb[0].mxu0
      %v465 = vadd.f32 0.0, %v464
      %v466 = vpop.f32.mrb[0].mxu0
      %v467 = vadd.f32 0.0, %v466
      %468 = vmatprep.mubr.bf16.mxu0 0
      %469 = vmatmul.mubr.bf16.gmra.mrb[0].mxu0 %v364
      %v470 = vpop.f32.mrb[0].mxu0
      %v471 = vadd.f32 0.0, %v470
      %v472 = vpop.f32.mrb[0].mxu0
      %v473 = vadd.f32 0.0, %v472
      %v474 = vpop.f32.mrb[0].mxu0
      %v475 = vadd.f32 0.0, %v474
      %v476 = vpop.f32.mrb[0].mxu0
      %v477 = vadd.f32 0.0, %v476
      %478 = vmatprep.mubr.bf16.mxu0 0
      %479 = vmatmul.mubr.bf16.gmra.mrb[0].mxu0 %v367
      %v480 = vpop.f32.mrb[0].mxu0
      %v481 = vadd.f32 0.0, %v480
      %v482 = vpop.f32.mrb[0].mxu0
      %v483 = vadd.f32 0.0, %v482
      %v484 = vpop.f32.mrb[0].mxu0
      %v485 = vadd.f32 0.0, %v484
      %v486 = vpop.f32.mrb[0].mxu0
      %v487 = vadd.f32 0.0, %v486
      %488 = vdwg.mxu0
      %v489 = vld [vmem:[%s4] sm:$0x1]
      %v491 = vlaneseq
      %v492 = vshrl.u32 %v491, 7
      %v493 = vsub.s32 0, %v492
      %v494 = vrot.slane %v489, %v493
      %v496 = vadd.f32 %v411, %v494
      %v497 = vadd.f32 %v415, %v494
      %v498 = vadd.f32 %v421, %v494
      %v499 = vadd.f32 %v425, %v494
      %v500 = vadd.f32 %v431, %v494
      %v501 = vadd.f32 %v435, %v494
      %v502 = vadd.f32 %v441, %v494
      %v503 = vadd.f32 %v445, %v494
      %v504 = vadd.f32 %v451, %v494
      %v505 = vadd.f32 %v455, %v494
      %v506 = vadd.f32 %v461, %v494
      %v507 = vadd.f32 %v465, %v494
      %v508 = vadd.f32 %v471, %v494
      %v509 = vadd.f32 %v475, %v494
      %v510 = vadd.f32 %v481, %v494
      %v511 = vadd.f32 %v485, %v494
      %v512 = vxor.u32 %v496, 2147483648
      %v513 = vxor.u32 %v497, 2147483648
      %v514 = vxor.u32 %v498, 2147483648
      %v515 = vxor.u32 %v499, 2147483648
      %v516 = vxor.u32 %v500, 2147483648
      %v517 = vxor.u32 %v501, 2147483648
      %v518 = vxor.u32 %v502, 2147483648
      %v519 = vxor.u32 %v503, 2147483648
      %v520 = vxor.u32 %v504, 2147483648
      %v521 = vxor.u32 %v505, 2147483648
      %v522 = vxor.u32 %v506, 2147483648
      %v523 = vxor.u32 %v507, 2147483648
      %v524 = vxor.u32 %v508, 2147483648
      %v525 = vxor.u32 %v509, 2147483648
      %v526 = vxor.u32 %v510, 2147483648
      %v527 = vxor.u32 %v511, 2147483648
      %v528 = vmul.f32 %v512, 1.442695
      %v529 = vpow.pop %v528
      %v530 = vmul.f32 %v513, 1.442695
      %v531 = vpow.pop %v530
      %v532 = vmul.f32 %v514, 1.442695
      %v533 = vpow.pop %v532
      %v534 = vmul.f32 %v515, 1.442695
      %v535 = vpow.pop %v534
      %v536 = vmul.f32 %v516, 1.442695
      %v537 = vpow.pop %v536
      %v538 = vmul.f32 %v517, 1.442695
      %v539 = vpow.pop %v538
      %v540 = vmul.f32 %v518, 1.442695
      %v541 = vpow.pop %v540
      %v542 = vmul.f32 %v519, 1.442695
      %v543 = vpow.pop %v542
      %v544 = vmul.f32 %v520, 1.442695
      %v545 = vpow.pop %v544
      %v546 = vmul.f32 %v521, 1.442695
      %v547 = vpow.pop %v546
      %v548 = vmul.f32 %v522, 1.442695
      %v549 = vpow.pop %v548
      %v550 = vmul.f32 %v523, 1.442695
      %v551 = vpow.pop %v550
      %v552 = vmul.f32 %v524, 1.442695
      %v553 = vpow.pop %v552
      %v554 = vmul.f32 %v525, 1.442695
      %v555 = vpow.pop %v554
      %v556 = vmul.f32 %v526, 1.442695
      %v557 = vpow.pop %v556
      %v558 = vmul.f32 %v527, 1.442695
      %v559 = vpow.pop %v558
      %v560 = vadd.f32 %v529, 1.0
      %v561 = vadd.f32 %v531, 1.0
      %v562 = vadd.f32 %v533, 1.0
      %v563 = vadd.f32 %v535, 1.0
      %v564 = vadd.f32 %v537, 1.0
      %v565 = vadd.f32 %v539, 1.0
      %v566 = vadd.f32 %v541, 1.0
      %v567 = vadd.f32 %v543, 1.0
      %v568 = vadd.f32 %v545, 1.0
      %v569 = vadd.f32 %v547, 1.0
      %v570 = vadd.f32 %v549, 1.0
      %v571 = vadd.f32 %v551, 1.0
      %v572 = vadd.f32 %v553, 1.0
      %v573 = vadd.f32 %v555, 1.0
      %v574 = vadd.f32 %v557, 1.0
      %v575 = vadd.f32 %v559, 1.0
      %v576 = vrcp.pop %v560
      %v577 = vmul.f32 1.0, %v576
      %v578 = vrcp.pop %v561
      %v579 = vmul.f32 1.0, %v578
      %v580 = vrcp.pop %v562
      %v581 = vmul.f32 1.0, %v580
      %v582 = vrcp.pop %v563
      %v583 = vmul.f32 1.0, %v582
      %v584 = vrcp.pop %v564
      %v585 = vmul.f32 1.0, %v584
      %v586 = vrcp.pop %v565
      %v587 = vmul.f32 1.0, %v586
      %v588 = vrcp.pop %v566
      %v589 = vmul.f32 1.0, %v588
      %v590 = vrcp.pop %v567
      %v591 = vmul.f32 1.0, %v590
      %v592 = vrcp.pop %v568
      %v593 = vmul.f32 1.0, %v592
      %v594 = vrcp.pop %v569
      %v595 = vmul.f32 1.0, %v594
      %v596 = vrcp.pop %v570
      %v597 = vmul.f32 1.0, %v596
      %v598 = vrcp.pop %v571
      %v599 = vmul.f32 1.0, %v598
      %v600 = vrcp.pop %v572
      %v601 = vmul.f32 1.0, %v600
      %v602 = vrcp.pop %v573
      %v603 = vmul.f32 1.0, %v602
      %v604 = vrcp.pop %v574
      %v605 = vmul.f32 1.0, %v604
      %v606 = vrcp.pop %v575
      %v607 = vmul.f32 1.0, %v606
      %v608 = vmul.f32 %v496, %v577
      %v609 = vmul.f32 %v497, %v579
      %v610 = vmul.f32 %v498, %v581
      %v611 = vmul.f32 %v499, %v583
      %v612 = vmul.f32 %v500, %v585
      %v613 = vmul.f32 %v501, %v587
      %v614 = vmul.f32 %v502, %v589
      %v615 = vmul.f32 %v503, %v591
      %v616 = vmul.f32 %v504, %v593
      %v617 = vmul.f32 %v505, %v595
      %v618 = vmul.f32 %v506, %v597
      %v619 = vmul.f32 %v507, %v599
      %v620 = vmul.f32 %v508, %v601
      %v621 = vmul.f32 %v509, %v603
      %v622 = vmul.f32 %v510, %v605
      %v623 = vmul.f32 %v511, %v607
      %v624 = vpack.c.bf16 %v609, %v608
      %v625 = vpack.c.bf16 %v611, %v610
      %v626 = vpack.c.bf16 %v613, %v612
      %v627 = vpack.c.bf16 %v615, %v614
      %v628 = vpack.c.bf16 %v617, %v616
      %v629 = vpack.c.bf16 %v619, %v618
      %v630 = vpack.c.bf16 %v621, %v620
      %v631 = vpack.c.bf16 %v623, %v622
      %v632 = vld [vmem:[%s3] sm:$0xf]
      %v633 = vld [vmem:[%s3 + $0x4] sm:$0xf]
      %v634 = vld [vmem:[%s3 + $0x8] sm:$0xf]
      %v635 = vld [vmem:[%s3 + $0xc] sm:$0xf]
      %v636 = vld [vmem:[%s3 + $0x10] sm:$0xf]
      %v637 = vld [vmem:[%s3 + $0x14] sm:$0xf]
      %v638 = vld [vmem:[%s3 + $0x18] sm:$0xf]
      %v639 = vld [vmem:[%s3 + $0x1c] sm:$0xf]
      %v640 = vld [vmem:[%s3 + $0x20] sm:$0xf]
      %v641 = vld [vmem:[%s3 + $0x24] sm:$0xf]
      %v642 = vld [vmem:[%s3 + $0x28] sm:$0xf]
      %v643 = vld [vmem:[%s3 + $0x2c] sm:$0xf]
      %v644 = vld [vmem:[%s3 + $0x30] sm:$0xf]
      %v645 = vld [vmem:[%s3 + $0x34] sm:$0xf]
      %v646 = vld [vmem:[%s3 + $0x38] sm:$0xf]
      %v647 = vld [vmem:[%s3 + $0x3c] sm:$0xf]
      %v648 = vld [vmem:[%s5] sm:$0x1]
      %v650 = vlaneseq
      %v651 = vshrl.u32 %v650, 7
      %v652 = vsub.s32 0, %v651
      %v653 = vrot.slane %v648, %v652
      %v671 = vunpack.c.l.b16 %v632
      %v672 = vunpack.c.l.b16 %v633
      %v673 = vunpack.c.l.b16 %v634
      %v674 = vunpack.c.l.b16 %v635
      %v675 = vunpack.c.l.b16 %v636
      %v676 = vunpack.c.l.b16 %v637
      %v677 = vunpack.c.l.b16 %v638
      %v678 = vunpack.c.l.b16 %v639
      %v679 = vunpack.c.l.b16 %v640
      %v680 = vunpack.c.l.b16 %v641
      %v681 = vunpack.c.l.b16 %v642
      %v682 = vunpack.c.l.b16 %v643
      %v683 = vunpack.c.l.b16 %v644
      %v684 = vunpack.c.l.b16 %v645
      %v685 = vunpack.c.l.b16 %v646
      %v686 = vunpack.c.l.b16 %v647
      %v687 = vpack.c.b16 %v672, %v671
      %v688 = vpack.c.b16 %v674, %v673
      %v689 = vpack.c.b16 %v676, %v675
      %v690 = vpack.c.b16 %v678, %v677
      %v691 = vpack.c.b16 %v680, %v679
      %v692 = vpack.c.b16 %v682, %v681
      %v693 = vpack.c.b16 %v684, %v683
      %v694 = vpack.c.b16 %v686, %v685
      %703 = vmatprep.subr.bf16.mxu0 0
      %704 = vmatpush1.bf16.msra.mxu0 %v687
      %705 = vmatprep.subr.bf16.mxu0 0
      %706 = vmatpush1.bf16.msra.mxu0 %v688
      %707 = vmatprep.subr.bf16.mxu0 0
      %708 = vmatpush1.bf16.msra.mxu0 %v689
      %709 = vmatprep.subr.bf16.mxu0 0
      %710 = vmatpush1.bf16.msra.mxu0 %v690
      %711 = vmatprep.subr.bf16.mxu0 0
      %712 = vmatpush1.bf16.msra.mxu0 %v691
      %713 = vmatprep.subr.bf16.mxu0 0
      %714 = vmatpush1.bf16.msra.mxu0 %v692
      %715 = vmatprep.subr.bf16.mxu0 0
      %716 = vmatpush1.bf16.msra.mxu0 %v693
      %717 = vmatprep.subr.bf16.mxu0 0
      %718 = vmatpush1.bf16.msra.mxu0 %v694
      %719 = vmatprep.subr.bf16.mxu0 0
      %720 = vmatpush1.bf16.msra.mxu0 0
      %721 = vmatprep.subr.bf16.mxu0 0
      %722 = vmatpush1.bf16.msra.mxu0 0
      %723 = vmatprep.subr.bf16.mxu0 0
      %724 = vmatpush1.bf16.msra.mxu0 0
      %725 = vmatprep.subr.bf16.mxu0 0
      %726 = vmatpush1.bf16.msra.mxu0 0
      %727 = vmatprep.subr.bf16.mxu0 0
      %728 = vmatpush1.bf16.msra.mxu0 0
      %729 = vmatprep.subr.bf16.mxu0 0
      %730 = vmatpush1.bf16.msra.mxu0 0
      %731 = vmatprep.subr.bf16.mxu0 0
      %732 = vmatpush1.bf16.msra.mxu0 0
      %733 = vmatprep.subr.bf16.mxu0 0
      %734 = vmatpush1.bf16.msra.mxu0 0
      %735 = vmatprep.mubr.bf16.mxu0 0
      %736 = vmatmul.mubr.bf16.gmra.mrb[0].mxu0 %v624
      %v737 = vpop.f32.mrb[0].mxu0
      %v738 = vadd.f32 %v653, %v737
      %v739 = vpop.f32.mrb[0].mxu0
      %v740 = vpop.f32.mrb[0].mxu0
      %v741 = vadd.f32 %v653, %v740
      %v742 = vpop.f32.mrb[0].mxu0
      %743 = vmatprep.mubr.bf16.mxu0 0
      %744 = vmatmul.mubr.bf16.gmra.mrb[0].mxu0 %v625
      %v745 = vpop.f32.mrb[0].mxu0
      %v746 = vadd.f32 %v653, %v745
      %v747 = vpop.f32.mrb[0].mxu0
      %v748 = vpop.f32.mrb[0].mxu0
      %v749 = vadd.f32 %v653, %v748
      %v750 = vpop.f32.mrb[0].mxu0
      %751 = vmatprep.mubr.bf16.mxu0 0
      %752 = vmatmul.mubr.bf16.gmra.mrb[0].mxu0 %v626
      %v753 = vpop.f32.mrb[0].mxu0
      %v754 = vadd.f32 %v653, %v753
      %v755 = vpop.f32.mrb[0].mxu0
      %v756 = vpop.f32.mrb[0].mxu0
      %v757 = vadd.f32 %v653, %v756
      %v758 = vpop.f32.mrb[0].mxu0
      %759 = vmatprep.mubr.bf16.mxu0 0
      %760 = vmatmul.mubr.bf16.gmra.mrb[0].mxu0 %v627
      %v761 = vpop.f32.mrb[0].mxu0
      %v762 = vadd.f32 %v653, %v761
      %v763 = vpop.f32.mrb[0].mxu0
      %v764 = vpop.f32.mrb[0].mxu0
      %v765 = vadd.f32 %v653, %v764
      %v766 = vpop.f32.mrb[0].mxu0
      %767 = vmatprep.mubr.bf16.mxu0 0
      %768 = vmatmul.mubr.bf16.gmra.mrb[0].mxu0 %v628
      %v769 = vpop.f32.mrb[0].mxu0
      %v770 = vadd.f32 %v653, %v769
      %v771 = vpop.f32.mrb[0].mxu0
      %v772 = vpop.f32.mrb[0].mxu0
      %v773 = vadd.f32 %v653, %v772
      %v774 = vpop.f32.mrb[0].mxu0
      %775 = vmatprep.mubr.bf16.mxu0 0
      %776 = vmatmul.mubr.bf16.gmra.mrb[0].mxu0 %v629
      %v777 = vpop.f32.mrb[0].mxu0
      %v778 = vadd.f32 %v653, %v777
      %v779 = vpop.f32.mrb[0].mxu0
      %v780 = vpop.f32.mrb[0].mxu0
      %v781 = vadd.f32 %v653, %v780
      %v782 = vpop.f32.mrb[0].mxu0
      %783 = vmatprep.mubr.bf16.mxu0 0
      %784 = vmatmul.mubr.bf16.gmra.mrb[0].mxu0 %v630
      %v785 = vpop.f32.mrb[0].mxu0
      %v786 = vadd.f32 %v653, %v785
      %v787 = vpop.f32.mrb[0].mxu0
      %v788 = vpop.f32.mrb[0].mxu0
      %v789 = vadd.f32 %v653, %v788
      %v790 = vpop.f32.mrb[0].mxu0
      %791 = vmatprep.mubr.bf16.mxu0 0
      %792 = vmatmul.mubr.bf16.gmra.mrb[0].mxu0 %v631
      %v793 = vpop.f32.mrb[0].mxu0
      %v794 = vadd.f32 %v653, %v793
      %v795 = vpop.f32.mrb[0].mxu0
      %v796 = vpop.f32.mrb[0].mxu0
      %v797 = vadd.f32 %v653, %v796
      %v798 = vpop.f32.mrb[0].mxu0
      %799 = vdwg.mxu0
      %v800 = vstv %s257
      %v801 = vmul.f32 %v800, %v738
      %v802 = vmul.f32 %v800, %v741
      %v803 = vmul.f32 %v800, %v746
      %v804 = vmul.f32 %v800, %v749
      %v805 = vmul.f32 %v800, %v754
      %v806 = vmul.f32 %v800, %v757
      %v807 = vmul.f32 %v800, %v762
      %v808 = vmul.f32 %v800, %v765
      %v809 = vmul.f32 %v800, %v770
      %v810 = vmul.f32 %v800, %v773
      %v811 = vmul.f32 %v800, %v778
      %v812 = vmul.f32 %v800, %v781
      %v813 = vmul.f32 %v800, %v786
      %v814 = vmul.f32 %v800, %v789
      %v815 = vmul.f32 %v800, %v794
      %v816 = vmul.f32 %v800, %v797
      %v817 = vadd.f32 %v413, %v801
      %v818 = vadd.f32 %v417, %v802
      %v819 = vadd.f32 %v423, %v803
      %v820 = vadd.f32 %v427, %v804
      %v821 = vadd.f32 %v433, %v805
      %v822 = vadd.f32 %v437, %v806
      %v823 = vadd.f32 %v443, %v807
      %v824 = vadd.f32 %v447, %v808
      %v825 = vadd.f32 %v453, %v809
      %v826 = vadd.f32 %v457, %v810
      %v827 = vadd.f32 %v463, %v811
      %v828 = vadd.f32 %v467, %v812
      %v829 = vadd.f32 %v473, %v813
      %v830 = vadd.f32 %v477, %v814
      %v831 = vadd.f32 %v483, %v815
      %v832 = vadd.f32 %v487, %v816
      %v833 = vmax.f32 %v817, 0.0
      %v834 = vmax.f32 %v818, 0.0
      %v835 = vmax.f32 %v819, 0.0
      %v836 = vmax.f32 %v820, 0.0
      %v837 = vmax.f32 %v821, 0.0
      %v838 = vmax.f32 %v822, 0.0
      %v839 = vmax.f32 %v823, 0.0
      %v840 = vmax.f32 %v824, 0.0
      %v841 = vmax.f32 %v825, 0.0
      %v842 = vmax.f32 %v826, 0.0
      %v843 = vmax.f32 %v827, 0.0
      %v844 = vmax.f32 %v828, 0.0
      %v845 = vmax.f32 %v829, 0.0
      %v846 = vmax.f32 %v830, 0.0
      %v847 = vmax.f32 %v831, 0.0
      %v848 = vmax.f32 %v832, 0.0
      %v849 = vmin.f32 %v833, 1.0
      %v850 = vmin.f32 %v834, 1.0
      %v851 = vmin.f32 %v835, 1.0
      %v852 = vmin.f32 %v836, 1.0
      %v853 = vmin.f32 %v837, 1.0
      %v854 = vmin.f32 %v838, 1.0
      %v855 = vmin.f32 %v839, 1.0
      %v856 = vmin.f32 %v840, 1.0
      %v857 = vmin.f32 %v841, 1.0
      %v858 = vmin.f32 %v842, 1.0
      %v859 = vmin.f32 %v843, 1.0
      %v860 = vmin.f32 %v844, 1.0
      %v861 = vmin.f32 %v845, 1.0
      %v862 = vmin.f32 %v846, 1.0
      %v863 = vmin.f32 %v847, 1.0
      %v864 = vmin.f32 %v848, 1.0
      %v865 = vpack.c.bf16 %v850, %v849
      %v866 = vpack.c.bf16 %v852, %v851
      %v867 = vpack.c.bf16 %v854, %v853
      %v868 = vpack.c.bf16 %v856, %v855
      %v869 = vpack.c.bf16 %v858, %v857
      %v870 = vpack.c.bf16 %v860, %v859
      %v871 = vpack.c.bf16 %v862, %v861
      %v872 = vpack.c.bf16 %v864, %v863
      %v881 = vunpack.c.l.b16 %v865
      %v882 = vunpack.c.h.b16 %v865
      %v883 = vunpack.c.l.b16 %v866
      %v884 = vunpack.c.h.b16 %v866
      %v885 = vunpack.c.l.b16 %v867
      %v886 = vunpack.c.h.b16 %v867
      %v887 = vunpack.c.l.b16 %v868
      %v888 = vunpack.c.h.b16 %v868
      %v889 = vunpack.c.l.b16 %v869
      %v890 = vunpack.c.h.b16 %v869
      %v891 = vunpack.c.l.b16 %v870
      %v892 = vunpack.c.h.b16 %v870
      %v893 = vunpack.c.l.b16 %v871
      %v894 = vunpack.c.h.b16 %v871
      %v895 = vunpack.c.l.b16 %v872
      %v896 = vunpack.c.h.b16 %v872
      %v897 = vpack.c.b16 %v881, %v881
      %v898 = vpack.c.b16 %v882, %v882
      %v899 = vpack.c.b16 %v883, %v883
      %v900 = vpack.c.b16 %v884, %v884
      %v901 = vpack.c.b16 %v885, %v885
      %v902 = vpack.c.b16 %v886, %v886
      %v903 = vpack.c.b16 %v887, %v887
      %v904 = vpack.c.b16 %v888, %v888
      %v905 = vpack.c.b16 %v889, %v889
      %v906 = vpack.c.b16 %v890, %v890
      %v907 = vpack.c.b16 %v891, %v891
      %v908 = vpack.c.b16 %v892, %v892
      %v909 = vpack.c.b16 %v893, %v893
      %v910 = vpack.c.b16 %v894, %v894
      %v911 = vpack.c.b16 %v895, %v895
      %v912 = vpack.c.b16 %v896, %v896
      %929 = vst [vmem:[%s254] sm:$0xf] %v897
      %930 = vst [vmem:[%s254 + $0x4] sm:$0xf] %v898
      %931 = vst [vmem:[%s254 + $0x8] sm:$0xf] %v899
      %932 = vst [vmem:[%s254 + $0xc] sm:$0xf] %v900
      %933 = vst [vmem:[%s254 + $0x10] sm:$0xf] %v901
      %934 = vst [vmem:[%s254 + $0x14] sm:$0xf] %v902
      %935 = vst [vmem:[%s254 + $0x18] sm:$0xf] %v903
      %936 = vst [vmem:[%s254 + $0x1c] sm:$0xf] %v904
      %937 = vst [vmem:[%s254 + $0x20] sm:$0xf] %v905
      %938 = vst [vmem:[%s254 + $0x24] sm:$0xf] %v906
      %939 = vst [vmem:[%s254 + $0x28] sm:$0xf] %v907
      %940 = vst [vmem:[%s254 + $0x2c] sm:$0xf] %v908
      %941 = vst [vmem:[%s254 + $0x30] sm:$0xf] %v909
      %942 = vst [vmem:[%s254 + $0x34] sm:$0xf] %v910
      %943 = vst [vmem:[%s254 + $0x38] sm:$0xf] %v911
      %944 = vst [vmem:[%s254 + $0x3c] sm:$0xf] %v912
      %s945 = smul.u32 16, %s18
      %p946 = scmp.lt.s32.totalorder %s945, 31
      %s947 = scalar_select %p946, %s945, 31
      %s948 = smul.addr %s947, 4
      %s949 = scalar_lea.vmem %s6, %s948
      // Predicated region
      $region45: #{multi_viewer_forward.5} parent=43 // pred_check
        %p950 = pneg %p167
      $region46: #{multi_viewer_forward.5} parent=43 // pred_check_branch
        %952 = sbr.rel (%p950) target = $region48
      $region47: #{multi_viewer_forward.5} parent=43 // pred_region
        %s953 = smul.u32 16, %s18
      $region48: #{multi_viewer_forward.5} parent=43 // pred_fallthru
        _
    $region44: #{multi_viewer_forward.5} parent=5 // pred_fallthru
      _
    %p954 = scmp.le.s32.totalorder 2, %s13
    // Predicated region
    $region49: #{multi_viewer_forward.5} parent=5 // pred_check
      %p955 = pneg %p954
    $region50: #{multi_viewer_forward.5} parent=5 // pred_check_branch
      %957 = sbr.rel (%p955) target = $region52
    $region51: #{multi_viewer_forward.5} parent=5 // pred_region
      %s958 = ssub.s32 %s13, 2
      // Predicated region
      $region53: #{multi_viewer_forward.5} parent=51 // pred_check
        %p959 = pneg %p173
      $region54: #{multi_viewer_forward.5} parent=51 // pred_check_branch
        %961 = sbr.rel (%p959) target = $region56
      $region55: #{multi_viewer_forward.5} parent=51 // pred_region
        %s962 = smul.u32 16, %s19
        %p963 = scmp.lt.s32.totalorder %s962, 31
        %s964 = scalar_select %p963, %s962, 31
        %s965 = smul.addr %s964, 4
        %s966 = scalar_lea.vmem %s6, %s965
      $region56: #{multi_viewer_forward.5} parent=51 // pred_fallthru
        _
    $region52: #{multi_viewer_forward.5} parent=5 // pred_fallthru
      _
  $region6: #{multi_viewer_forward.5} parent=0 // loop_footer
    %s17 = sadd.s32 1, %s13
  $region7: #{multi_viewer_forward.5} parent=0 // loop_footer_branch
    %12 = sbr.rel target = $region3
  $region8: #{multi_viewer_forward.5} parent=0 // loop_exit
    _

</llo_original>
